<compile_context>
chip_gen: v7x
topology: tpu7x:2x2x1
jax: 0.10.0
libtpu: 0.0.40
codegen_flags: <defaults>
</compile_context>

<pallas_src>
import jax
import jax.numpy as jnp
from jax.experimental import pallas as pl
from jax.experimental.pallas import tpu as pltpu


def _round_up(x, m):
    return (x + m - 1) // m * m


def _make_rnn_kernel(L, T, Bp, Ep, Hp, Vp):
    """Build the kernel for static sizes.

    Ref order:
      inputs : x(T*Bp, Ep) bf16, h0(L, Bp, Hp) f32,
               [w_ih_t(in_p, Hp) bf16, w_hh_t(Hp, Hp) bf16, b(1, Hp) f32] * L,
               w_fc_t(Hp, Vp) bf16, b_fc(1, Vp) f32
      outputs: out(T*Bp, Vp) f32, hn(L, Bp, Hp) f32
      scratch: pre_s(T*Bp, Hp) f32   (in-place ping: read row t, then overwrite
                                      with the next layer's pre-activation)
    """
    n_in = 2 + 3 * L + 2

    def kernel(*refs):
        x_ref, h0_ref = refs[0], refs[1]
        wrefs = refs[2:2 + 3 * L]
        wfc_ref, bfc_ref = refs[n_in - 2], refs[n_in - 1]
        out_ref, hn_ref = refs[n_in], refs[n_in + 1]
        pre_s = refs[n_in + 2]

        # Hoist small operands once (trace-time reuse; no per-step reloads).
        w_fc = wfc_ref[...]                       # (Hp, Vp) bf16
        b_fc = bfc_ref[...]                       # (1, Vp)  f32

        # Layer-0 input projection + fused bias for the whole sequence: one
        # lane-dense (T*Bp, Ep) @ (Ep, Hp) MXU matmul, off the serial path.
        pre_s[...] = jnp.dot(x_ref[...], wrefs[0][...],
                             preferred_element_type=jnp.float32) + wrefs[2][...]

        for l in range(L):
            w_hh_t = wrefs[3 * l + 1][...]        # (Hp, Hp) bf16
            last = (l == L - 1)
            if not last:
                w_ih_next = wrefs[3 * (l + 1) + 0][...]   # (Hp, Hp) bf16
                b_next = wrefs[3 * (l + 1) + 2][...]      # (1, Hp)  f32

            # Serial recurrence: only h @ W_hh^T is on the critical path per
            # step.  The wavefront matmul issued right after each step (next
            # layer's projection, or the fused FC on the last layer) is
            # independent filler for the idle MXU.
            h = h0_ref[l]                         # (Bp, Hp) f32 carry
            for t in range(T):
                row = t * Bp                      # static, tile-aligned offset
                pre_t = pre_s[pl.ds(row, Bp), :]  # consumed before overwrite
                h = jnp.maximum(
                    pre_t + jnp.dot(h.astype(jnp.bfloat16), w_hh_t,
                                    preferred_element_type=jnp.float32),
                    0.0)
                h_bf = h.astype(jnp.bfloat16)
                if last:
                    # Fused FC for this timestep: full (Bp, Vp) tile store.
                    out_ref[pl.ds(row, Bp), :] = (
                        jnp.dot(h_bf, w_fc,
                                preferred_element_type=jnp.float32) + b_fc)
                else:
                    # Wavefront: next layer's pre-activation for step t.
                    pre_s[pl.ds(row, Bp), :] = (
                        jnp.dot(h_bf, w_ih_next,
                                preferred_element_type=jnp.float32) + b_next)
            hn_ref[l] = h

    return kernel


def rnn_model_forward(params, tokens, h0):
    """tokens: (B, T) int32, h0: (L, B, H) f32 -> (out (B,T,V), hn (L,B,H))."""
    B, T = tokens.shape
    L = params["num_layers"]
    H = params["hidden_size"]
    E = params["embed_size"]
    V = params["vocab_size"]

    Bp = _round_up(B, 8)      # sublane multiple (pad further only if real
                              # batch grows — garbage rows add no throughput)
    Ep = _round_up(E, 128)    # lane multiples
    Hp = _round_up(H, 128)
    Vp = _round_up(V, 128)

    # Embedding gather (XLA glue), time-major, padded, flattened to (T*Bp, Ep).
    x = jnp.take(params["embed"].astype(jnp.bfloat16), tokens.T, axis=0)  # (T,B,E)
    x = jnp.pad(x, ((0, 0), (0, Bp - B), (0, Ep - E)))
    x = x.reshape(T * Bp, Ep)

    h0p = jnp.pad(h0.astype(jnp.float32),
                  ((0, 0), (0, Bp - B), (0, Hp - H)))                     # (L,Bp,Hp)

    args = [x, h0p]
    for l in range(L):
        in_dim = E if l == 0 else H
        in_p = Ep if l == 0 else Hp
        w_ih_t = jnp.pad(params[f"w_ih_{l}"].T,
                         ((0, in_p - in_dim), (0, Hp - H))).astype(jnp.bfloat16)
        w_hh_t = jnp.pad(params[f"w_hh_{l}"].T,
                         ((0, Hp - H), (0, Hp - H))).astype(jnp.bfloat16)
        b = jnp.pad((params[f"b_ih_{l}"] + params[f"b_hh_{l}"])[None, :],
                    ((0, 0), (0, Hp - H))).astype(jnp.float32)
        args += [w_ih_t, w_hh_t, b]
    w_fc_t = jnp.pad(params["w_fc"].T,
                     ((0, Hp - H), (0, Vp - V))).astype(jnp.bfloat16)
    b_fc = jnp.pad(params["b_fc"][None, :],
                   ((0, 0), (0, Vp - V))).astype(jnp.float32)
    args += [w_fc_t, b_fc]

    # Advisory cost estimate for XLA's scheduler.
    flops = 2 * T * Bp * Ep * Hp                      # layer-0 projection
    flops += 2 * L * T * Bp * Hp * Hp                 # recurrent matmuls
    flops += 2 * (L - 1) * T * Bp * Hp * Hp           # wavefront projections
    flops += 2 * T * Bp * Hp * Vp                     # fused FC
    bytes_accessed = (sum(int(a.size) * a.dtype.itemsize for a in args)
                      + T * Bp * Vp * 4 + L * Bp * Hp * 4)

    vmem = pl.BlockSpec(memory_space=pltpu.MemorySpace.VMEM)
    out_flat, hn_p = pl.pallas_call(
        _make_rnn_kernel(L, T, Bp, Ep, Hp, Vp),
        out_shape=(jax.ShapeDtypeStruct((T * Bp, Vp), jnp.float32),
                   jax.ShapeDtypeStruct((L, Bp, Hp), jnp.float32)),
        in_specs=[vmem] * len(args),
        out_specs=(vmem, vmem),
        scratch_shapes=[pltpu.VMEM((T * Bp, Hp), jnp.float32)],  # pre-activations
        cost_estimate=pl.CostEstimate(flops=flops, transcendentals=0,
                                      bytes_accessed=bytes_accessed),
    )(*args)

    # Un-pad / reorder the (tiny) outputs back to batch_first.
    out = out_flat.reshape(T, Bp, Vp)[:, :B, :V]
    out = jnp.transpose(out, (1, 0, 2))                          # (B, T, V)
    hn = hn_p[:, :B, :H]                                         # (L, B, H)
    return out, hn


def init_params(key, embed_size, hidden_size, num_layers, vocab_size):
    """Deterministic synthetic parameters matching the nn.Module shapes."""
    keys = jax.random.split(key, 4 * num_layers + 3)
    k = hidden_size ** -0.5
    p = {
        "embed_size": embed_size,
        "hidden_size": hidden_size,
        "num_layers": num_layers,
        "vocab_size": vocab_size,
        "embed": jax.random.normal(keys[0], (vocab_size, embed_size),
                                   dtype=jnp.float32),
    }
    idx = 1
    for l in range(num_layers):
        in_dim = embed_size if l == 0 else hidden_size
        p[f"w_ih_{l}"] = jax.random.uniform(keys[idx], (hidden_size, in_dim),
                                            minval=-k, maxval=k,
                                            dtype=jnp.float32); idx += 1
        p[f"w_hh_{l}"] = jax.random.uniform(keys[idx], (hidden_size, hidden_size),
                                            minval=-k, maxval=k,
                                            dtype=jnp.float32); idx += 1
        p[f"b_ih_{l}"] = jax.random.uniform(keys[idx], (hidden_size,),
                                            minval=-k, maxval=k,
                                            dtype=jnp.float32); idx += 1
        p[f"b_hh_{l}"] = jax.random.uniform(keys[idx], (hidden_size,),
                                            minval=-k, maxval=k,
                                            dtype=jnp.float32); idx += 1
    p["w_fc"] = jax.random.uniform(keys[idx], (vocab_size, hidden_size),
                                   minval=-k, maxval=k, dtype=jnp.float32)
    p["b_fc"] = jax.random.uniform(keys[idx + 1], (vocab_size,),
                                   minval=-k, maxval=k, dtype=jnp.float32)
    return p


def rnn_model_ref_f32(params, tokens, h0):
    """Pure-JAX f32 reference replicating nn.RNN(relu, batch_first) + Linear."""
    seq = jnp.take(params["embed"], tokens, axis=0)             # (B, T, E)
    L = params["num_layers"]
    hn = []
    for l in range(L):
        w_ih = params[f"w_ih_{l}"]
        w_hh = params[f"w_hh_{l}"]
        b = params[f"b_ih_{l}"] + params[f"b_hh_{l}"]
        h = h0[l]
        outs = []
        for t in range(seq.shape[1]):
            h = jnp.maximum(seq[:, t] @ w_ih.T + h @ w_hh.T + b, 0.0)
            outs.append(h)
        seq = jnp.stack(outs, axis=1)
        hn.append(h)
    out = seq @ params["w_fc"].T + params["b_fc"]
    return out, jnp.stack(hn, axis=0)


def rnn_model_ref_bf16(params, tokens, h0):
    """Reference with the kernel's exact numerics: bf16 MXU operands, f32 acc."""
    bf = jnp.bfloat16
    B, T = tokens.shape
    seq = jnp.take(params["embed"].astype(bf), tokens, axis=0)  # (B, T, E) bf16
    L = params["num_layers"]
    hn = []
    for l in range(L):
        w_ih_t = params[f"w_ih_{l}"].T.astype(bf)
        w_hh_t = params[f"w_hh_{l}"].T.astype(bf)
        b = (params[f"b_ih_{l}"] + params[f"b_hh_{l}"]).astype(jnp.float32)
        in_dim = seq.shape[-1]
        pre = jnp.dot(seq.reshape(B * T, in_dim), w_ih_t,
                      preferred_element_type=jnp.float32)
        pre = pre.reshape(B, T, -1) + b
        h = h0[l].astype(jnp.float32)
        outs = []
        for t in range(T):
            h = jnp.maximum(
                pre[:, t] + jnp.dot(h.astype(bf), w_hh_t,
                                    preferred_element_type=jnp.float32), 0.0)
            outs.append(h.astype(bf))
        seq = jnp.stack(outs, axis=1)
        hn.append(h)
    H = seq.shape[-1]
    out = jnp.dot(seq.reshape(B * T, H), params["w_fc"].T.astype(bf),
                  preferred_element_type=jnp.float32) + params["b_fc"]
    return out.reshape(B, T, -1), jnp.stack(hn, axis=0)


if __name__ == "__main__":
    B, T = 2, 8
    embed_size, hidden_size, num_layers, vocab_size = 32, 32, 2, 64

    key = jax.random.PRNGKey(0)
    k_param, k_tok, k_h0 = jax.random.split(key, 3)

    params = init_params(k_param, embed_size, hidden_size, num_layers, vocab_size)
    tokens = jax.random.randint(k_tok, (B, T), 0, vocab_size, dtype=jnp.int32)
    h0 = jax.random.normal(k_h0, (num_layers, B, hidden_size), dtype=jnp.float32)

    out, hn = rnn_model_forward(params, tokens, h0)
    out = jax.block_until_ready(out)
    hn = jax.block_until_ready(hn)
    assert out.shape == (B, T, vocab_size)
    assert hn.shape == (num_layers, B, hidden_size)

    # Tight check against a reference with identical numerics (bf16 MXU
    # operands, f32 accumulation).
    out_bf, hn_bf = rnn_model_ref_bf16(params, tokens, h0)
    assert jnp.allclose(out, out_bf, atol=2e-3, rtol=2e-3), "out mismatch (bf16 ref)"
    assert jnp.allclose(hn, hn_bf, atol=2e-3, rtol=2e-3), "hn mismatch (bf16 ref)"

    # Loose sanity check against the full-f32 module semantics (bf16 operand
    # rounding accumulated through the recurrence; compounds with T and L).
    out_f32, hn_f32 = rnn_model_ref_f32(params, tokens, h0)
    assert jnp.allclose(out, out_f32, atol=0.2, rtol=0.05), "out mismatch (f32 ref)"
    assert jnp.allclose(hn, hn_f32, atol=0.2, rtol=0.05), "hn mismatch (f32 ref)"

    print("KERNEL_OK")
</pallas_src>

<mosaic_0001>
module attributes {stable_mosaic.version = 11 : i64} {
  func.func @kernel(%arg0: memref<64x128xbf16, #tpu.memory_space<vmem>>, %arg1: memref<2x8x128xf32, #tpu.memory_space<vmem>>, %arg2: memref<128x128xbf16, #tpu.memory_space<vmem>>, %arg3: memref<128x128xbf16, #tpu.memory_space<vmem>>, %arg4: memref<1x128xf32, #tpu.memory_space<vmem>>, %arg5: memref<128x128xbf16, #tpu.memory_space<vmem>>, %arg6: memref<128x128xbf16, #tpu.memory_space<vmem>>, %arg7: memref<1x128xf32, #tpu.memory_space<vmem>>, %arg8: memref<128x128xbf16, #tpu.memory_space<vmem>>, %arg9: memref<1x128xf32, #tpu.memory_space<vmem>>, %arg10: memref<64x128xf32, #tpu.memory_space<vmem>>, %arg11: memref<2x8x128xf32, #tpu.memory_space<vmem>>, %arg12: memref<64x128xf32, #tpu.memory_space<vmem>>) attributes {dimension_semantics = [], scalar_prefetch = 0 : i64, scratch_operands = 1 : i64, tpu.core_type = #tpu.core_type<tc>} {
    %c0 = arith.constant 0 : index
    %c0_0 = arith.constant 0 : index
    %0 = vector.load %arg8[%c0, %c0_0] : memref<128x128xbf16, #tpu.memory_space<vmem>>, vector<128x128xbf16>
    %c0_1 = arith.constant 0 : index
    %c0_2 = arith.constant 0 : index
    %1 = vector.load %arg9[%c0_1, %c0_2] : memref<1x128xf32, #tpu.memory_space<vmem>>, vector<1x128xf32>
    %c0_3 = arith.constant 0 : index
    %c0_4 = arith.constant 0 : index
    %2 = vector.load %arg0[%c0_3, %c0_4] : memref<64x128xbf16, #tpu.memory_space<vmem>>, vector<64x128xbf16>
    %c0_5 = arith.constant 0 : index
    %c0_6 = arith.constant 0 : index
    %3 = vector.load %arg2[%c0_5, %c0_6] : memref<128x128xbf16, #tpu.memory_space<vmem>>, vector<128x128xbf16>
    %cst = arith.constant dense<0.000000e+00> : vector<64x128xf32>
    %4 = tpu.matmul %2, %3, %cst {dimension_numbers = #tpu.dot_dimension_numbers<[1], [0], [0], [1], [0, 0, 1, 1], [], []>} : vector<64x128xbf16>, vector<128x128xbf16>, vector<64x128xf32> -> vector<64x128xf32>
    %c0_7 = arith.constant 0 : index
    %c0_8 = arith.constant 0 : index
    %5 = vector.load %arg4[%c0_7, %c0_8] : memref<1x128xf32, #tpu.memory_space<vmem>>, vector<1x128xf32>
    %6 = vector.broadcast %5 : vector<1x128xf32> to vector<64x128xf32>
    %7 = arith.addf %4, %6 : vector<64x128xf32>
    %c0_9 = arith.constant 0 : index
    %c0_10 = arith.constant 0 : index
    %8 = vector.load %arg12[%c0_9, %c0_10] : memref<64x128xf32, #tpu.memory_space<vmem>>, vector<64x128xf32>
    tpu.vector_store %arg12[%c0_9, %c0_10], %7 {strides = array<i32>} : memref<64x128xf32, #tpu.memory_space<vmem>>, vector<64x128xf32>,
    %c0_11 = arith.constant 0 : index
    %c0_12 = arith.constant 0 : index
    %9 = vector.load %arg3[%c0_11, %c0_12] : memref<128x128xbf16, #tpu.memory_space<vmem>>, vector<128x128xbf16>
    %c0_13 = arith.constant 0 : index
    %c0_14 = arith.constant 0 : index
    %10 = vector.load %arg5[%c0_13, %c0_14] : memref<128x128xbf16, #tpu.memory_space<vmem>>, vector<128x128xbf16>
    %c0_15 = arith.constant 0 : index
    %c0_16 = arith.constant 0 : index
    %11 = vector.load %arg7[%c0_15, %c0_16] : memref<1x128xf32, #tpu.memory_space<vmem>>, vector<1x128xf32>
    %c0_17 = arith.constant 0 : index
    %c0_18 = arith.constant 0 : index
    %c0_19 = arith.constant 0 : index
    %12 = vector.load %arg1[%c0_17, %c0_18, %c0_19] : memref<2x8x128xf32, #tpu.memory_space<vmem>>, vector<1x8x128xf32>
    %13 = vector.shape_cast %12 : vector<1x8x128xf32> to vector<8x128xf32>
    %c0_20 = arith.constant 0 : index
    %c0_21 = arith.constant 0 : index
    %14 = vector.load %arg12[%c0_20, %c0_21] : memref<64x128xf32, #tpu.memory_space<vmem>>, vector<8x128xf32>
    %15 = arith.truncf %13 : vector<8x128xf32> to vector<8x128xbf16>
    %cst_22 = arith.constant dense<0.000000e+00> : vector<8x128xf32>
    %16 = tpu.matmul %15, %9, %cst_22 {dimension_numbers = #tpu.dot_dimension_numbers<[1], [0], [0], [1], [0, 0, 1, 1], [], []>} : vector<8x128xbf16>, vector<128x128xbf16>, vector<8x128xf32> -> vector<8x128xf32>
    %17 = arith.addf %14, %16 : vector<8x128xf32>
    %cst_23 = arith.constant 0.000000e+00 : f32
    %18 = vector.broadcast %cst_23 : f32 to vector<8x128xf32>
    %19 = arith.maximumf %17, %18 : vector<8x128xf32>
    %20 = arith.truncf %19 : vector<8x128xf32> to vector<8x128xbf16>
    %cst_24 = arith.constant dense<0.000000e+00> : vector<8x128xf32>
    %21 = tpu.matmul %20, %10, %cst_24 {dimension_numbers = #tpu.dot_dimension_numbers<[1], [0], [0], [1], [0, 0, 1, 1], [], []>} : vector<8x128xbf16>, vector<128x128xbf16>, vector<8x128xf32> -> vector<8x128xf32>
    %22 = vector.broadcast %11 : vector<1x128xf32> to vector<8x128xf32>
    %23 = arith.addf %21, %22 : vector<8x128xf32>
    %c0_25 = arith.constant 0 : index
    %c0_26 = arith.constant 0 : index
    %24 = vector.load %arg12[%c0_25, %c0_26] : memref<64x128xf32, #tpu.memory_space<vmem>>, vector<8x128xf32>
    tpu.vector_store %arg12[%c0_25, %c0_26], %23 {strides = array<i32>} : memref<64x128xf32, #tpu.memory_space<vmem>>, vector<8x128xf32>,
    %c8 = arith.constant 8 : index
    %c0_27 = arith.constant 0 : index
    %25 = vector.load %arg12[%c8, %c0_27] : memref<64x128xf32, #tpu.memory_space<vmem>>, vector<8x128xf32>
    %26 = arith.truncf %19 : vector<8x128xf32> to vector<8x128xbf16>
    %cst_28 = arith.constant dense<0.000000e+00> : vector<8x128xf32>
    %27 = tpu.matmul %26, %9, %cst_28 {dimension_numbers = #tpu.dot_dimension_numbers<[1], [0], [0], [1], [0, 0, 1, 1], [], []>} : vector<8x128xbf16>, vector<128x128xbf16>, vector<8x128xf32> -> vector<8x128xf32>
    %28 = arith.addf %25, %27 : vector<8x128xf32>
    %cst_29 = arith.constant 0.000000e+00 : f32
    %29 = vector.broadcast %cst_29 : f32 to vector<8x128xf32>
    %30 = arith.maximumf %28, %29 : vector<8x128xf32>
    %31 = arith.truncf %30 : vector<8x128xf32> to vector<8x128xbf16>
    %cst_30 = arith.constant dense<0.000000e+00> : vector<8x128xf32>
    %32 = tpu.matmul %31, %10, %cst_30 {dimension_numbers = #tpu.dot_dimension_numbers<[1], [0], [0], [1], [0, 0, 1, 1], [], []>} : vector<8x128xbf16>, vector<128x128xbf16>, vector<8x128xf32> -> vector<8x128xf32>
    %33 = vector.broadcast %11 : vector<1x128xf32> to vector<8x128xf32>
    %34 = arith.addf %32, %33 : vector<8x128xf32>
    %c8_31 = arith.constant 8 : index
    %c0_32 = arith.constant 0 : index
    %35 = vector.load %arg12[%c8_31, %c0_32] : memref<64x128xf32, #tpu.memory_space<vmem>>, vector<8x128xf32>
    tpu.vector_store %arg12[%c8_31, %c0_32], %34 {strides = array<i32>} : memref<64x128xf32, #tpu.memory_space<vmem>>, vector<8x128xf32>,
    %c16 = arith.constant 16 : index
    %c0_33 = arith.constant 0 : index
    %36 = vector.load %arg12[%c16, %c0_33] : memref<64x128xf32, #tpu.memory_space<vmem>>, vector<8x128xf32>
    %37 = arith.truncf %30 : vector<8x128xf32> to vector<8x128xbf16>
    %cst_34 = arith.constant dense<0.000000e+00> : vector<8x128xf32>
    %38 = tpu.matmul %37, %9, %cst_34 {dimension_numbers = #tpu.dot_dimension_numbers<[1], [0], [0], [1], [0, 0, 1, 1], [], []>} : vector<8x128xbf16>, vector<128x128xbf16>, vector<8x128xf32> -> vector<8x128xf32>
    %39 = arith.addf %36, %38 : vector<8x128xf32>
    %cst_35 = arith.constant 0.000000e+00 : f32
    %40 = vector.broadcast %cst_35 : f32 to vector<8x128xf32>
    %41 = arith.maximumf %39, %40 : vector<8x128xf32>
    %42 = arith.truncf %41 : vector<8x128xf32> to vector<8x128xbf16>
    %cst_36 = arith.constant dense<0.000000e+00> : vector<8x128xf32>
    %43 = tpu.matmul %42, %10, %cst_36 {dimension_numbers = #tpu.dot_dimension_numbers<[1], [0], [0], [1], [0, 0, 1, 1], [], []>} : vector<8x128xbf16>, vector<128x128xbf16>, vector<8x128xf32> -> vector<8x128xf32>
    %44 = vector.broadcast %11 : vector<1x128xf32> to vector<8x128xf32>
    %45 = arith.addf %43, %44 : vector<8x128xf32>
    %c16_37 = arith.constant 16 : index
    %c0_38 = arith.constant 0 : index
    %46 = vector.load %arg12[%c16_37, %c0_38] : memref<64x128xf32, #tpu.memory_space<vmem>>, vector<8x128xf32>
    tpu.vector_store %arg12[%c16_37, %c0_38], %45 {strides = array<i32>} : memref<64x128xf32, #tpu.memory_space<vmem>>, vector<8x128xf32>,
    %c24 = arith.constant 24 : index
    %c0_39 = arith.constant 0 : index
    %47 = vector.load %arg12[%c24, %c0_39] : memref<64x128xf32, #tpu.memory_space<vmem>>, vector<8x128xf32>
    %48 = arith.truncf %41 : vector<8x128xf32> to vector<8x128xbf16>
    %cst_40 = arith.constant dense<0.000000e+00> : vector<8x128xf32>
    %49 = tpu.matmul %48, %9, %cst_40 {dimension_numbers = #tpu.dot_dimension_numbers<[1], [0], [0], [1], [0, 0, 1, 1], [], []>} : vector<8x128xbf16>, vector<128x128xbf16>, vector<8x128xf32> -> vector<8x128xf32>
    %50 = arith.addf %47, %49 : vector<8x128xf32>
    %cst_41 = arith.constant 0.000000e+00 : f32
    %51 = vector.broadcast %cst_41 : f32 to vector<8x128xf32>
    %52 = arith.maximumf %50, %51 : vector<8x128xf32>
    %53 = arith.truncf %52 : vector<8x128xf32> to vector<8x128xbf16>
    %cst_42 = arith.constant dense<0.000000e+00> : vector<8x128xf32>
    %54 = tpu.matmul %53, %10, %cst_42 {dimension_numbers = #tpu.dot_dimension_numbers<[1], [0], [0], [1], [0, 0, 1, 1], [], []>} : vector<8x128xbf16>, vector<128x128xbf16>, vector<8x128xf32> -> vector<8x128xf32>
    %55 = vector.broadcast %11 : vector<1x128xf32> to vector<8x128xf32>
    %56 = arith.addf %54, %55 : vector<8x128xf32>
    %c24_43 = arith.constant 24 : index
    %c0_44 = arith.constant 0 : index
    %57 = vector.load %arg12[%c24_43, %c0_44] : memref<64x128xf32, #tpu.memory_space<vmem>>, vector<8x128xf32>
    tpu.vector_store %arg12[%c24_43, %c0_44], %56 {strides = array<i32>} : memref<64x128xf32, #tpu.memory_space<vmem>>, vector<8x128xf32>,
    %c32 = arith.constant 32 : index
    %c0_45 = arith.constant 0 : index
    %58 = vector.load %arg12[%c32, %c0_45] : memref<64x128xf32, #tpu.memory_space<vmem>>, vector<8x128xf32>
    %59 = arith.truncf %52 : vector<8x128xf32> to vector<8x128xbf16>
    %cst_46 = arith.constant dense<0.000000e+00> : vector<8x128xf32>
    %60 = tpu.matmul %59, %9, %cst_46 {dimension_numbers = #tpu.dot_dimension_numbers<[1], [0], [0], [1], [0, 0, 1, 1], [], []>} : vector<8x128xbf16>, vector<128x128xbf16>, vector<8x128xf32> -> vector<8x128xf32>
    %61 = arith.addf %58, %60 : vector<8x128xf32>
    %cst_47 = arith.constant 0.000000e+00 : f32
    %62 = vector.broadcast %cst_47 : f32 to vector<8x128xf32>
    %63 = arith.maximumf %61, %62 : vector<8x128xf32>
    %64 = arith.truncf %63 : vector<8x128xf32> to vector<8x128xbf16>
    %cst_48 = arith.constant dense<0.000000e+00> : vector<8x128xf32>
    %65 = tpu.matmul %64, %10, %cst_48 {dimension_numbers = #tpu.dot_dimension_numbers<[1], [0], [0], [1], [0, 0, 1, 1], [], []>} : vector<8x128xbf16>, vector<128x128xbf16>, vector<8x128xf32> -> vector<8x128xf32>
    %66 = vector.broadcast %11 : vector<1x128xf32> to vector<8x128xf32>
    %67 = arith.addf %65, %66 : vector<8x128xf32>
    %c32_49 = arith.constant 32 : index
    %c0_50 = arith.constant 0 : index
    %68 = vector.load %arg12[%c32_49, %c0_50] : memref<64x128xf32, #tpu.memory_space<vmem>>, vector<8x128xf32>
    tpu.vector_store %arg12[%c32_49, %c0_50], %67 {strides = array<i32>} : memref<64x128xf32, #tpu.memory_space<vmem>>, vector<8x128xf32>,
    %c40 = arith.constant 40 : index
    %c0_51 = arith.constant 0 : index
    %69 = vector.load %arg12[%c40, %c0_51] : memref<64x128xf32, #tpu.memory_space<vmem>>, vector<8x128xf32>
    %70 = arith.truncf %63 : vector<8x128xf32> to vector<8x128xbf16>
    %cst_52 = arith.constant dense<0.000000e+00> : vector<8x128xf32>
    %71 = tpu.matmul %70, %9, %cst_52 {dimension_numbers = #tpu.dot_dimension_numbers<[1], [0], [0], [1], [0, 0, 1, 1], [], []>} : vector<8x128xbf16>, vector<128x128xbf16>, vector<8x128xf32> -> vector<8x128xf32>
    %72 = arith.addf %69, %71 : vector<8x128xf32>
    %cst_53 = arith.constant 0.000000e+00 : f32
    %73 = vector.broadcast %cst_53 : f32 to vector<8x128xf32>
    %74 = arith.maximumf %72, %73 : vector<8x128xf32>
    %75 = arith.truncf %74 : vector<8x128xf32> to vector<8x128xbf16>
    %cst_54 = arith.constant dense<0.000000e+00> : vector<8x128xf32>
    %76 = tpu.matmul %75, %10, %cst_54 {dimension_numbers = #tpu.dot_dimension_numbers<[1], [0], [0], [1], [0, 0, 1, 1], [], []>} : vector<8x128xbf16>, vector<128x128xbf16>, vector<8x128xf32> -> vector<8x128xf32>
    %77 = vector.broadcast %11 : vector<1x128xf32> to vector<8x128xf32>
    %78 = arith.addf %76, %77 : vector<8x128xf32>
    %c40_55 = arith.constant 40 : index
    %c0_56 = arith.constant 0 : index
    %79 = vector.load %arg12[%c40_55, %c0_56] : memref<64x128xf32, #tpu.memory_space<vmem>>, vector<8x128xf32>
    tpu.vector_store %arg12[%c40_55, %c0_56], %78 {strides = array<i32>} : memref<64x128xf32, #tpu.memory_space<vmem>>, vector<8x128xf32>,
    %c48 = arith.constant 48 : index
    %c0_57 = arith.constant 0 : index
    %80 = vector.load %arg12[%c48, %c0_57] : memref<64x128xf32, #tpu.memory_space<vmem>>, vector<8x128xf32>
    %81 = arith.truncf %74 : vector<8x128xf32> to vector<8x128xbf16>
    %cst_58 = arith.constant dense<0.000000e+00> : vector<8x128xf32>
    %82 = tpu.matmul %81, %9, %cst_58 {dimension_numbers = #tpu.dot_dimension_numbers<[1], [0], [0], [1], [0, 0, 1, 1], [], []>} : vector<8x128xbf16>, vector<128x128xbf16>, vector<8x128xf32> -> vector<8x128xf32>
    %83 = arith.addf %80, %82 : vector<8x128xf32>
    %cst_59 = arith.constant 0.000000e+00 : f32
    %84 = vector.broadcast %cst_59 : f32 to vector<8x128xf32>
    %85 = arith.maximumf %83, %84 : vector<8x128xf32>
    %86 = arith.truncf %85 : vector<8x128xf32> to vector<8x128xbf16>
    %cst_60 = arith.constant dense<0.000000e+00> : vector<8x128xf32>
    %87 = tpu.matmul %86, %10, %cst_60 {dimension_numbers = #tpu.dot_dimension_numbers<[1], [0], [0], [1], [0, 0, 1, 1], [], []>} : vector<8x128xbf16>, vector<128x128xbf16>, vector<8x128xf32> -> vector<8x128xf32>
    %88 = vector.broadcast %11 : vector<1x128xf32> to vector<8x128xf32>
    %89 = arith.addf %87, %88 : vector<8x128xf32>
    %c48_61 = arith.constant 48 : index
    %c0_62 = arith.constant 0 : index
    %90 = vector.load %arg12[%c48_61, %c0_62] : memref<64x128xf32, #tpu.memory_space<vmem>>, vector<8x128xf32>
    tpu.vector_store %arg12[%c48_61, %c0_62], %89 {strides = array<i32>} : memref<64x128xf32, #tpu.memory_space<vmem>>, vector<8x128xf32>,
    %c56 = arith.constant 56 : index
    %c0_63 = arith.constant 0 : index
    %91 = vector.load %arg12[%c56, %c0_63] : memref<64x128xf32, #tpu.memory_space<vmem>>, vector<8x128xf32>
    %92 = arith.truncf %85 : vector<8x128xf32> to vector<8x128xbf16>
    %cst_64 = arith.constant dense<0.000000e+00> : vector<8x128xf32>
    %93 = tpu.matmul %92, %9, %cst_64 {dimension_numbers = #tpu.dot_dimension_numbers<[1], [0], [0], [1], [0, 0, 1, 1], [], []>} : vector<8x128xbf16>, vector<128x128xbf16>, vector<8x128xf32> -> vector<8x128xf32>
    %94 = arith.addf %91, %93 : vector<8x128xf32>
    %cst_65 = arith.constant 0.000000e+00 : f32
    %95 = vector.broadcast %cst_65 : f32 to vector<8x128xf32>
    %96 = arith.maximumf %94, %95 : vector<8x128xf32>
    %97 = arith.truncf %96 : vector<8x128xf32> to vector<8x128xbf16>
    %cst_66 = arith.constant dense<0.000000e+00> : vector<8x128xf32>
    %98 = tpu.matmul %97, %10, %cst_66 {dimension_numbers = #tpu.dot_dimension_numbers<[1], [0], [0], [1], [0, 0, 1, 1], [], []>} : vector<8x128xbf16>, vector<128x128xbf16>, vector<8x128xf32> -> vector<8x128xf32>
    %99 = vector.broadcast %11 : vector<1x128xf32> to vector<8x128xf32>
    %100 = arith.addf %98, %99 : vector<8x128xf32>
    %c56_67 = arith.constant 56 : index
    %c0_68 = arith.constant 0 : index
    %101 = vector.load %arg12[%c56_67, %c0_68] : memref<64x128xf32, #tpu.memory_space<vmem>>, vector<8x128xf32>
    tpu.vector_store %arg12[%c56_67, %c0_68], %100 {strides = array<i32>} : memref<64x128xf32, #tpu.memory_space<vmem>>, vector<8x128xf32>,
    %c0_69 = arith.constant 0 : index
    %c0_70 = arith.constant 0 : index
    %c0_71 = arith.constant 0 : index
    %102 = vector.load %arg11[%c0_69, %c0_70, %c0_71] : memref<2x8x128xf32, #tpu.memory_space<vmem>>, vector<1x8x128xf32>
    %103 = vector.shape_cast %102 : vector<1x8x128xf32> to vector<8x128xf32>
    %104 = vector.shape_cast %96 : vector<8x128xf32> to vector<1x8x128xf32>
    tpu.vector_store %arg11[%c0_69, %c0_70, %c0_71], %104 {strides = array<i32>} : memref<2x8x128xf32, #tpu.memory_space<vmem>>, vector<1x8x128xf32>,
    %c0_72 = arith.constant 0 : index
    %c0_73 = arith.constant 0 : index
    %105 = vector.load %arg6[%c0_72, %c0_73] : memref<128x128xbf16, #tpu.memory_space<vmem>>, vector<128x128xbf16>
    %c1 = arith.constant 1 : index
    %c0_74 = arith.constant 0 : index
    %c0_75 = arith.constant 0 : index
    %106 = vector.load %arg1[%c1, %c0_74, %c0_75] : memref<2x8x128xf32, #tpu.memory_space<vmem>>, vector<1x8x128xf32>
    %107 = vector.shape_cast %106 : vector<1x8x128xf32> to vector<8x128xf32>
    %c0_76 = arith.constant 0 : index
    %c0_77 = arith.constant 0 : index
    %108 = vector.load %arg12[%c0_76, %c0_77] : memref<64x128xf32, #tpu.memory_space<vmem>>, vector<8x128xf32>
    %109 = arith.truncf %107 : vector<8x128xf32> to vector<8x128xbf16>
    %cst_78 = arith.constant dense<0.000000e+00> : vector<8x128xf32>
    %110 = tpu.matmul %109, %105, %cst_78 {dimension_numbers = #tpu.dot_dimension_numbers<[1], [0], [0], [1], [0, 0, 1, 1], [], []>} : vector<8x128xbf16>, vector<128x128xbf16>, vector<8x128xf32> -> vector<8x128xf32>
    %111 = arith.addf %108, %110 : vector<8x128xf32>
    %cst_79 = arith.constant 0.000000e+00 : f32
    %112 = vector.broadcast %cst_79 : f32 to vector<8x128xf32>
    %113 = arith.maximumf %111, %112 : vector<8x128xf32>
    %114 = arith.truncf %113 : vector<8x128xf32> to vector<8x128xbf16>
    %cst_80 = arith.constant dense<0.000000e+00> : vector<8x128xf32>
    %115 = tpu.matmul %114, %0, %cst_80 {dimension_numbers = #tpu.dot_dimension_numbers<[1], [0], [0], [1], [0, 0, 1, 1], [], []>} : vector<8x128xbf16>, vector<128x128xbf16>, vector<8x128xf32> -> vector<8x128xf32>
    %116 = vector.broadcast %1 : vector<1x128xf32> to vector<8x128xf32>
    %117 = arith.addf %115, %116 : vector<8x128xf32>
    %c0_81 = arith.constant 0 : index
    %c0_82 = arith.constant 0 : index
    %118 = vector.load %arg10[%c0_81, %c0_82] : memref<64x128xf32, #tpu.memory_space<vmem>>, vector<8x128xf32>
    tpu.vector_store %arg10[%c0_81, %c0_82], %117 {strides = array<i32>} : memref<64x128xf32, #tpu.memory_space<vmem>>, vector<8x128xf32>,
    %c8_83 = arith.constant 8 : index
    %c0_84 = arith.constant 0 : index
    %119 = vector.load %arg12[%c8_83, %c0_84] : memref<64x128xf32, #tpu.memory_space<vmem>>, vector<8x128xf32>
    %120 = arith.truncf %113 : vector<8x128xf32> to vector<8x128xbf16>
    %cst_85 = arith.constant dense<0.000000e+00> : vector<8x128xf32>
    %121 = tpu.matmul %120, %105, %cst_85 {dimension_numbers = #tpu.dot_dimension_numbers<[1], [0], [0], [1], [0, 0, 1, 1], [], []>} : vector<8x128xbf16>, vector<128x128xbf16>, vector<8x128xf32> -> vector<8x128xf32>
    %122 = arith.addf %119, %121 : vector<8x128xf32>
    %cst_86 = arith.constant 0.000000e+00 : f32
    %123 = vector.broadcast %cst_86 : f32 to vector<8x128xf32>
    %124 = arith.maximumf %122, %123 : vector<8x128xf32>
    %125 = arith.truncf %124 : vector<8x128xf32> to vector<8x128xbf16>
    %cst_87 = arith.constant dense<0.000000e+00> : vector<8x128xf32>
    %126 = tpu.matmul %125, %0, %cst_87 {dimension_numbers = #tpu.dot_dimension_numbers<[1], [0], [0], [1], [0, 0, 1, 1], [], []>} : vector<8x128xbf16>, vector<128x128xbf16>, vector<8x128xf32> -> vector<8x128xf32>
    %127 = vector.broadcast %1 : vector<1x128xf32> to vector<8x128xf32>
    %128 = arith.addf %126, %127 : vector<8x128xf32>
    %c8_88 = arith.constant 8 : index
    %c0_89 = arith.constant 0 : index
    %129 = vector.load %arg10[%c8_88, %c0_89] : memref<64x128xf32, #tpu.memory_space<vmem>>, vector<8x128xf32>
    tpu.vector_store %arg10[%c8_88, %c0_89], %128 {strides = array<i32>} : memref<64x128xf32, #tpu.memory_space<vmem>>, vector<8x128xf32>,
    %c16_90 = arith.constant 16 : index
    %c0_91 = arith.constant 0 : index
    %130 = vector.load %arg12[%c16_90, %c0_91] : memref<64x128xf32, #tpu.memory_space<vmem>>, vector<8x128xf32>
    %131 = arith.truncf %124 : vector<8x128xf32> to vector<8x128xbf16>
    %cst_92 = arith.constant dense<0.000000e+00> : vector<8x128xf32>
    %132 = tpu.matmul %131, %105, %cst_92 {dimension_numbers = #tpu.dot_dimension_numbers<[1], [0], [0], [1], [0, 0, 1, 1], [], []>} : vector<8x128xbf16>, vector<128x128xbf16>, vector<8x128xf32> -> vector<8x128xf32>
    %133 = arith.addf %130, %132 : vector<8x128xf32>
    %cst_93 = arith.constant 0.000000e+00 : f32
    %134 = vector.broadcast %cst_93 : f32 to vector<8x128xf32>
    %135 = arith.maximumf %133, %134 : vector<8x128xf32>
    %136 = arith.truncf %135 : vector<8x128xf32> to vector<8x128xbf16>
    %cst_94 = arith.constant dense<0.000000e+00> : vector<8x128xf32>
    %137 = tpu.matmul %136, %0, %cst_94 {dimension_numbers = #tpu.dot_dimension_numbers<[1], [0], [0], [1], [0, 0, 1, 1], [], []>} : vector<8x128xbf16>, vector<128x128xbf16>, vector<8x128xf32> -> vector<8x128xf32>
    %138 = vector.broadcast %1 : vector<1x128xf32> to vector<8x128xf32>
    %139 = arith.addf %137, %138 : vector<8x128xf32>
    %c16_95 = arith.constant 16 : index
    %c0_96 = arith.constant 0 : index
    %140 = vector.load %arg10[%c16_95, %c0_96] : memref<64x128xf32, #tpu.memory_space<vmem>>, vector<8x128xf32>
    tpu.vector_store %arg10[%c16_95, %c0_96], %139 {strides = array<i32>} : memref<64x128xf32, #tpu.memory_space<vmem>>, vector<8x128xf32>,
    %c24_97 = arith.constant 24 : index
    %c0_98 = arith.constant 0 : index
    %141 = vector.load %arg12[%c24_97, %c0_98] : memref<64x128xf32, #tpu.memory_space<vmem>>, vector<8x128xf32>
    %142 = arith.truncf %135 : vector<8x128xf32> to vector<8x128xbf16>
    %cst_99 = arith.constant dense<0.000000e+00> : vector<8x128xf32>
    %143 = tpu.matmul %142, %105, %cst_99 {dimension_numbers = #tpu.dot_dimension_numbers<[1], [0], [0], [1], [0, 0, 1, 1], [], []>} : vector<8x128xbf16>, vector<128x128xbf16>, vector<8x128xf32> -> vector<8x128xf32>
    %144 = arith.addf %141, %143 : vector<8x128xf32>
    %cst_100 = arith.constant 0.000000e+00 : f32
    %145 = vector.broadcast %cst_100 : f32 to vector<8x128xf32>
    %146 = arith.maximumf %144, %145 : vector<8x128xf32>
    %147 = arith.truncf %146 : vector<8x128xf32> to vector<8x128xbf16>
    %cst_101 = arith.constant dense<0.000000e+00> : vector<8x128xf32>
    %148 = tpu.matmul %147, %0, %cst_101 {dimension_numbers = #tpu.dot_dimension_numbers<[1], [0], [0], [1], [0, 0, 1, 1], [], []>} : vector<8x128xbf16>, vector<128x128xbf16>, vector<8x128xf32> -> vector<8x128xf32>
    %149 = vector.broadcast %1 : vector<1x128xf32> to vector<8x128xf32>
    %150 = arith.addf %148, %149 : vector<8x128xf32>
    %c24_102 = arith.constant 24 : index
    %c0_103 = arith.constant 0 : index
    %151 = vector.load %arg10[%c24_102, %c0_103] : memref<64x128xf32, #tpu.memory_space<vmem>>, vector<8x128xf32>
    tpu.vector_store %arg10[%c24_102, %c0_103], %150 {strides = array<i32>} : memref<64x128xf32, #tpu.memory_space<vmem>>, vector<8x128xf32>,
    %c32_104 = arith.constant 32 : index
    %c0_105 = arith.constant 0 : index
    %152 = vector.load %arg12[%c32_104, %c0_105] : memref<64x128xf32, #tpu.memory_space<vmem>>, vector<8x128xf32>
    %153 = arith.truncf %146 : vector<8x128xf32> to vector<8x128xbf16>
    %cst_106 = arith.constant dense<0.000000e+00> : vector<8x128xf32>
    %154 = tpu.matmul %153, %105, %cst_106 {dimension_numbers = #tpu.dot_dimension_numbers<[1], [0], [0], [1], [0, 0, 1, 1], [], []>} : vector<8x128xbf16>, vector<128x128xbf16>, vector<8x128xf32> -> vector<8x128xf32>
    %155 = arith.addf %152, %154 : vector<8x128xf32>
    %cst_107 = arith.constant 0.000000e+00 : f32
    %156 = vector.broadcast %cst_107 : f32 to vector<8x128xf32>
    %157 = arith.maximumf %155, %156 : vector<8x128xf32>
    %158 = arith.truncf %157 : vector<8x128xf32> to vector<8x128xbf16>
    %cst_108 = arith.constant dense<0.000000e+00> : vector<8x128xf32>
    %159 = tpu.matmul %158, %0, %cst_108 {dimension_numbers = #tpu.dot_dimension_numbers<[1], [0], [0], [1], [0, 0, 1, 1], [], []>} : vector<8x128xbf16>, vector<128x128xbf16>, vector<8x128xf32> -> vector<8x128xf32>
    %160 = vector.broadcast %1 : vector<1x128xf32> to vector<8x128xf32>
    %161 = arith.addf %159, %160 : vector<8x128xf32>
    %c32_109 = arith.constant 32 : index
    %c0_110 = arith.constant 0 : index
    %162 = vector.load %arg10[%c32_109, %c0_110] : memref<64x128xf32, #tpu.memory_space<vmem>>, vector<8x128xf32>
    tpu.vector_store %arg10[%c32_109, %c0_110], %161 {strides = array<i32>} : memref<64x128xf32, #tpu.memory_space<vmem>>, vector<8x128xf32>,
    %c40_111 = arith.constant 40 : index
    %c0_112 = arith.constant 0 : index
    %163 = vector.load %arg12[%c40_111, %c0_112] : memref<64x128xf32, #tpu.memory_space<vmem>>, vector<8x128xf32>
    %164 = arith.truncf %157 : vector<8x128xf32> to vector<8x128xbf16>
    %cst_113 = arith.constant dense<0.000000e+00> : vector<8x128xf32>
    %165 = tpu.matmul %164, %105, %cst_113 {dimension_numbers = #tpu.dot_dimension_numbers<[1], [0], [0], [1], [0, 0, 1, 1], [], []>} : vector<8x128xbf16>, vector<128x128xbf16>, vector<8x128xf32> -> vector<8x128xf32>
    %166 = arith.addf %163, %165 : vector<8x128xf32>
    %cst_114 = arith.constant 0.000000e+00 : f32
    %167 = vector.broadcast %cst_114 : f32 to vector<8x128xf32>
    %168 = arith.maximumf %166, %167 : vector<8x128xf32>
    %169 = arith.truncf %168 : vector<8x128xf32> to vector<8x128xbf16>
    %cst_115 = arith.constant dense<0.000000e+00> : vector<8x128xf32>
    %170 = tpu.matmul %169, %0, %cst_115 {dimension_numbers = #tpu.dot_dimension_numbers<[1], [0], [0], [1], [0, 0, 1, 1], [], []>} : vector<8x128xbf16>, vector<128x128xbf16>, vector<8x128xf32> -> vector<8x128xf32>
    %171 = vector.broadcast %1 : vector<1x128xf32> to vector<8x128xf32>
    %172 = arith.addf %170, %171 : vector<8x128xf32>
    %c40_116 = arith.constant 40 : index
    %c0_117 = arith.constant 0 : index
    %173 = vector.load %arg10[%c40_116, %c0_117] : memref<64x128xf32, #tpu.memory_space<vmem>>, vector<8x128xf32>
    tpu.vector_store %arg10[%c40_116, %c0_117], %172 {strides = array<i32>} : memref<64x128xf32, #tpu.memory_space<vmem>>, vector<8x128xf32>,
    %c48_118 = arith.constant 48 : index
    %c0_119 = arith.constant 0 : index
    %174 = vector.load %arg12[%c48_118, %c0_119] : memref<64x128xf32, #tpu.memory_space<vmem>>, vector<8x128xf32>
    %175 = arith.truncf %168 : vector<8x128xf32> to vector<8x128xbf16>
    %cst_120 = arith.constant dense<0.000000e+00> : vector<8x128xf32>
    %176 = tpu.matmul %175, %105, %cst_120 {dimension_numbers = #tpu.dot_dimension_numbers<[1], [0], [0], [1], [0, 0, 1, 1], [], []>} : vector<8x128xbf16>, vector<128x128xbf16>, vector<8x128xf32> -> vector<8x128xf32>
    %177 = arith.addf %174, %176 : vector<8x128xf32>
    %cst_121 = arith.constant 0.000000e+00 : f32
    %178 = vector.broadcast %cst_121 : f32 to vector<8x128xf32>
    %179 = arith.maximumf %177, %178 : vector<8x128xf32>
    %180 = arith.truncf %179 : vector<8x128xf32> to vector<8x128xbf16>
    %cst_122 = arith.constant dense<0.000000e+00> : vector<8x128xf32>
    %181 = tpu.matmul %180, %0, %cst_122 {dimension_numbers = #tpu.dot_dimension_numbers<[1], [0], [0], [1], [0, 0, 1, 1], [], []>} : vector<8x128xbf16>, vector<128x128xbf16>, vector<8x128xf32> -> vector<8x128xf32>
    %182 = vector.broadcast %1 : vector<1x128xf32> to vector<8x128xf32>
    %183 = arith.addf %181, %182 : vector<8x128xf32>
    %c48_123 = arith.constant 48 : index
    %c0_124 = arith.constant 0 : index
    %184 = vector.load %arg10[%c48_123, %c0_124] : memref<64x128xf32, #tpu.memory_space<vmem>>, vector<8x128xf32>
    tpu.vector_store %arg10[%c48_123, %c0_124], %183 {strides = array<i32>} : memref<64x128xf32, #tpu.memory_space<vmem>>, vector<8x128xf32>,
    %c56_125 = arith.constant 56 : index
    %c0_126 = arith.constant 0 : index
    %185 = vector.load %arg12[%c56_125, %c0_126] : memref<64x128xf32, #tpu.memory_space<vmem>>, vector<8x128xf32>
    %186 = arith.truncf %179 : vector<8x128xf32> to vector<8x128xbf16>
    %cst_127 = arith.constant dense<0.000000e+00> : vector<8x128xf32>
    %187 = tpu.matmul %186, %105, %cst_127 {dimension_numbers = #tpu.dot_dimension_numbers<[1], [0], [0], [1], [0, 0, 1, 1], [], []>} : vector<8x128xbf16>, vector<128x128xbf16>, vector<8x128xf32> -> vector<8x128xf32>
    %188 = arith.addf %185, %187 : vector<8x128xf32>
    %cst_128 = arith.constant 0.000000e+00 : f32
    %189 = vector.broadcast %cst_128 : f32 to vector<8x128xf32>
    %190 = arith.maximumf %188, %189 : vector<8x128xf32>
    %191 = arith.truncf %190 : vector<8x128xf32> to vector<8x128xbf16>
    %cst_129 = arith.constant dense<0.000000e+00> : vector<8x128xf32>
    %192 = tpu.matmul %191, %0, %cst_129 {dimension_numbers = #tpu.dot_dimension_numbers<[1], [0], [0], [1], [0, 0, 1, 1], [], []>} : vector<8x128xbf16>, vector<128x128xbf16>, vector<8x128xf32> -> vector<8x128xf32>
    %193 = vector.broadcast %1 : vector<1x128xf32> to vector<8x128xf32>
    %194 = arith.addf %192, %193 : vector<8x128xf32>
    %c56_130 = arith.constant 56 : index
    %c0_131 = arith.constant 0 : index
    %195 = vector.load %arg10[%c56_130, %c0_131] : memref<64x128xf32, #tpu.memory_space<vmem>>, vector<8x128xf32>
    tpu.vector_store %arg10[%c56_130, %c0_131], %194 {strides = array<i32>} : memref<64x128xf32, #tpu.memory_space<vmem>>, vector<8x128xf32>,
    %c1_132 = arith.constant 1 : index
    %c0_133 = arith.constant 0 : index
    %c0_134 = arith.constant 0 : index
    %196 = vector.load %arg11[%c1_132, %c0_133, %c0_134] : memref<2x8x128xf32, #tpu.memory_space<vmem>>, vector<1x8x128xf32>
    %197 = vector.shape_cast %196 : vector<1x8x128xf32> to vector<8x128xf32>
    %198 = vector.shape_cast %190 : vector<8x128xf32> to vector<1x8x128xf32>
    tpu.vector_store %arg11[%c1_132, %c0_133, %c0_134], %198 {strides = array<i32>} : memref<2x8x128xf32, #tpu.memory_space<vmem>>, vector<1x8x128xf32>,
    return
  }
}

</mosaic_0001>

<llo_original>
// kernel: tpu_custom_call.1
$region0: #{tpu_custom_call.1}
  #allocation0 [shape = 'u32[]', space=smem, size = 0x4, offset = 0x4, fixed_abs, tag = 'smem constant byte address 0x4 - core index']
  #allocation1 [shape = 'u32[144,128]{1,0:T(1,128)}', space=vmem, size = 0x12000, scoped, tag = 'internal scratch']
  #allocation2 [shape = 'f32[64,128]{1,0:T(8,128)}', space=vmem, size = 0x8000, scoped, tag = 'scratch operand']
  %s0 = inlined_call_operand.hbm [shape: bf16[64,128], index: 0, kind: input, shape index: {}]
  %s1 = inlined_call_operand.hbm [shape: f32[2,8,128], index: 1, kind: input, shape index: {}]
  %s2 = inlined_call_operand.hbm [shape: bf16[128,128], index: 2, kind: input, shape index: {}]
  %s3 = inlined_call_operand.hbm [shape: bf16[128,128], index: 3, kind: input, shape index: {}]
  %s4 = inlined_call_operand.vmem [shape: f32[1,128], index: 4, kind: input, shape index: {}]
  %s5 = inlined_call_operand.hbm [shape: bf16[128,128], index: 5, kind: input, shape index: {}]
  %s6 = inlined_call_operand.hbm [shape: bf16[128,128], index: 6, kind: input, shape index: {}]
  %s7 = inlined_call_operand.vmem [shape: f32[1,128], index: 7, kind: input, shape index: {}]
  %s8 = inlined_call_operand.hbm [shape: bf16[128,128], index: 8, kind: input, shape index: {}]
  %s9 = inlined_call_operand.vmem [shape: f32[1,128], index: 9, kind: input, shape index: {}]
  %s10 = inlined_call_operand.hbm [shape: f32[64,128], index: 10, kind: output, shape index: {0}]
  %s11 = inlined_call_operand.hbm [shape: f32[2,8,128], index: 11, kind: output, shape index: {1}]
  %12 = xla_tuple %s10, %s11
  %s13 = sld [smem:[#allocation0]]
  $region86: #{tpu_custom_call.1} parent=0
    _
  %s15 = ssub.s32 1, %s13
  %s16 = scalar_select 0, %s15, %s13
  $region1: #{tpu_custom_call.1} parent=0
    #allocation3 [shape = 'u8[16384]{0}', space=vmem, size = 0x4000, scoped, tag = 'input window, operand 0, single buffered']
    #allocation4 [shape = 's32[1]{0}', space=sflag, size = 0x4, scoped, tag = 'scoped memory for tpu_custom_call.1']
    #allocation5 [shape = 's32[1]{0}', space=sflag, size = 0x4, scoped, tag = 'scoped memory for tpu_custom_call.1']
    #allocation6 [shape = 'u8[8192]{0}', space=vmem, size = 0x2000, scoped, tag = 'input window, operand 1, single buffered']
    #allocation7 [shape = 's32[1]{0}', space=sflag, size = 0x4, scoped, tag = 'scoped memory for tpu_custom_call.1']
    #allocation8 [shape = 'u8[32768]{0}', space=vmem, size = 0x8000, scoped, tag = 'input window, operand 2, single buffered']
    #allocation9 [shape = 'u8[32768]{0}', space=vmem, size = 0x8000, scoped, tag = 'input window, operand 3, single buffered']
    #allocation10 [shape = 's32[1]{0}', space=sflag, size = 0x4, scoped, tag = 'scoped memory for tpu_custom_call.1']
    #allocation11 [shape = 'u8[32768]{0}', space=vmem, size = 0x8000, scoped, tag = 'input window, operand 5, single buffered']
    #allocation12 [shape = 'u8[32768]{0}', space=vmem, size = 0x8000, scoped, tag = 'input window, operand 6, single buffered']
    #allocation13 [shape = 's32[1]{0}', space=sflag, size = 0x4, scoped, tag = 'scoped memory for tpu_custom_call.1']
    #allocation14 [shape = 'u8[32768]{0}', space=vmem, size = 0x8000, scoped, tag = 'input window, operand 8, single buffered']
    #allocation15 [shape = 'u8[32768]{0}', space=vmem, size = 0x8000, scoped, tag = 'output window, operand 0, single buffered']
    #allocation16 [shape = 'u8[8192]{0}', space=vmem, size = 0x2000, scoped, tag = 'output window, operand 1, single buffered']
    #allocation17 [shape = 's32[1]{0}', space=sflag, size = 0x4, scoped, tag = 'scoped memory for tpu_custom_call.1']
    %17 = vsyncpa [#allocation4], 0
    %18 = vsyncpa [#allocation7], 0
    %19 = vsyncpa [#allocation10], 0
    %20 = vsyncpa [#allocation13], 0
    %21 = vsyncpa [#allocation5], 0
    %22 = vsyncpa [#allocation17], 0
    // Predicated region
    $region2: #{tpu_custom_call.1} parent=1 // pred_check
      _
    $region3: #{tpu_custom_call.1} parent=1 // pred_check_branch
      %24 = sbr.rel (0) target = $region5
    $region4: #{tpu_custom_call.1} parent=1 // pred_region
      %s26 = ssub.s32 512, 512
      %27 = vsyncadd [#allocation4], %s26
      %s28 = sshll.u32 [#allocation3], 4
      %s29 = int_to_ptr.vmem [resolvable:$true] %s28
      %34 = dma.hbm_to_vmem [thread:$0]  %s0, 512, %s29, [#allocation4], 64, 64, 4
    $region5: #{tpu_custom_call.1} parent=1 // pred_fallthru
      _
    // Predicated region
    $region6: #{tpu_custom_call.1} parent=1 // pred_check
      _
    $region7: #{tpu_custom_call.1} parent=1 // pred_check_branch
      %36 = sbr.rel (0) target = $region9
    $region8: #{tpu_custom_call.1} parent=1 // pred_region
      %s38 = ssub.s32 256, 256
      %39 = vsyncadd [#allocation7], %s38
      %s40 = sshll.u32 [#allocation6], 4
      %s41 = int_to_ptr.vmem [resolvable:$true] %s40
      %46 = dma.hbm_to_vmem [thread:$0]  %s1, 256, %s41, [#allocation7], 128, 128, 8
    $region9: #{tpu_custom_call.1} parent=1 // pred_fallthru
      _
    // Predicated region
    $region10: #{tpu_custom_call.1} parent=1 // pred_check
      _
    $region11: #{tpu_custom_call.1} parent=1 // pred_check_branch
      %48 = sbr.rel (0) target = $region13
    $region12: #{tpu_custom_call.1} parent=1 // pred_region
      %s50 = ssub.s32 1024, 1024
      %51 = vsyncadd [#allocation7], %s50
      %s52 = sshll.u32 [#allocation8], 4
      %s53 = int_to_ptr.vmem [resolvable:$true] %s52
      %58 = dma.hbm_to_vmem [thread:$0]  %s2, 1024, %s53, [#allocation7], 64, 64, 4
    $region13: #{tpu_custom_call.1} parent=1 // pred_fallthru
      _
    // Predicated region
    $region14: #{tpu_custom_call.1} parent=1 // pred_check
      _
    $region15: #{tpu_custom_call.1} parent=1 // pred_check_branch
      %60 = sbr.rel (0) target = $region17
    $region16: #{tpu_custom_call.1} parent=1 // pred_region
      %s62 = ssub.s32 1024, 1024
      %63 = vsyncadd [#allocation10], %s62
      %s64 = sshll.u32 [#allocation9], 4
      %s65 = int_to_ptr.vmem [resolvable:$true] %s64
      %70 = dma.hbm_to_vmem [thread:$0]  %s3, 1024, %s65, [#allocation10], 64, 64, 4
    $region17: #{tpu_custom_call.1} parent=1 // pred_fallthru
      _
    // Predicated region
    $region18: #{tpu_custom_call.1} parent=1 // pred_check
      _
    $region19: #{tpu_custom_call.1} parent=1 // pred_check_branch
      %72 = sbr.rel (0) target = $region21
    $region20: #{tpu_custom_call.1} parent=1 // pred_region
      _
    $region21: #{tpu_custom_call.1} parent=1 // pred_fallthru
      _
    // Predicated region
    $region22: #{tpu_custom_call.1} parent=1 // pred_check
      _
    $region23: #{tpu_custom_call.1} parent=1 // pred_check_branch
      %74 = sbr.rel (0) target = $region25
    $region24: #{tpu_custom_call.1} parent=1 // pred_region
      %s76 = ssub.s32 1024, 1024
      %77 = vsyncadd [#allocation10], %s76
      %s78 = sshll.u32 [#allocation11], 4
      %s79 = int_to_ptr.vmem [resolvable:$true] %s78
      %84 = dma.hbm_to_vmem [thread:$0]  %s5, 1024, %s79, [#allocation10], 64, 64, 4
    $region25: #{tpu_custom_call.1} parent=1 // pred_fallthru
      _
    // Predicated region
    $region26: #{tpu_custom_call.1} parent=1 // pred_check
      _
    $region27: #{tpu_custom_call.1} parent=1 // pred_check_branch
      %86 = sbr.rel (0) target = $region29
    $region28: #{tpu_custom_call.1} parent=1 // pred_region
      %s88 = ssub.s32 1024, 1024
      %89 = vsyncadd [#allocation13], %s88
      %s90 = sshll.u32 [#allocation12], 4
      %s91 = int_to_ptr.vmem [resolvable:$true] %s90
      %96 = dma.hbm_to_vmem [thread:$0]  %s6, 1024, %s91, [#allocation13], 64, 64, 4
    $region29: #{tpu_custom_call.1} parent=1 // pred_fallthru
      _
    // Predicated region
    $region30: #{tpu_custom_call.1} parent=1 // pred_check
      _
    $region31: #{tpu_custom_call.1} parent=1 // pred_check_branch
      %98 = sbr.rel (0) target = $region33
    $region32: #{tpu_custom_call.1} parent=1 // pred_region
      _
    $region33: #{tpu_custom_call.1} parent=1 // pred_fallthru
      _
    // Predicated region
    $region34: #{tpu_custom_call.1} parent=1 // pred_check
      _
    $region35: #{tpu_custom_call.1} parent=1 // pred_check_branch
      %100 = sbr.rel (0) target = $region37
    $region36: #{tpu_custom_call.1} parent=1 // pred_region
      %s102 = ssub.s32 1024, 1024
      %103 = vsyncadd [#allocation13], %s102
      %s104 = sshll.u32 [#allocation14], 4
      %s105 = int_to_ptr.vmem [resolvable:$true] %s104
      %110 = dma.hbm_to_vmem [thread:$0]  %s8, 1024, %s105, [#allocation13], 64, 64, 4
    $region37: #{tpu_custom_call.1} parent=1 // pred_fallthru
      _
    // Predicated region
    $region38: #{tpu_custom_call.1} parent=1 // pred_check
      _
    $region39: #{tpu_custom_call.1} parent=1 // pred_check_branch
      %112 = sbr.rel (0) target = $region41
    $region40: #{tpu_custom_call.1} parent=1 // pred_region
      _
    $region41: #{tpu_custom_call.1} parent=1 // pred_fallthru
      _
    // Predicated region
    $region42: #{tpu_custom_call.1} parent=1 // pred_check
      _
    $region43: #{tpu_custom_call.1} parent=1 // pred_check_branch
      %114 = sbr.rel (0) target = $region45
    $region44: #{tpu_custom_call.1} parent=1 // pred_region
      %115 = dma.done [#allocation4], 512
    $region45: #{tpu_custom_call.1} parent=1 // pred_fallthru
      _
    // Predicated region
    $region46: #{tpu_custom_call.1} parent=1 // pred_check
      _
    $region47: #{tpu_custom_call.1} parent=1 // pred_check_branch
      %117 = sbr.rel (0) target = $region49
    $region48: #{tpu_custom_call.1} parent=1 // pred_region
      %118 = dma.done [#allocation7], 256
    $region49: #{tpu_custom_call.1} parent=1 // pred_fallthru
      _
    // Predicated region
    $region50: #{tpu_custom_call.1} parent=1 // pred_check
      _
    $region51: #{tpu_custom_call.1} parent=1 // pred_check_branch
      %120 = sbr.rel (0) target = $region53
    $region52: #{tpu_custom_call.1} parent=1 // pred_region
      %121 = dma.done [#allocation7], 1024
    $region53: #{tpu_custom_call.1} parent=1 // pred_fallthru
      _
    // Predicated region
    $region54: #{tpu_custom_call.1} parent=1 // pred_check
      _
    $region55: #{tpu_custom_call.1} parent=1 // pred_check_branch
      %123 = sbr.rel (0) target = $region57
    $region56: #{tpu_custom_call.1} parent=1 // pred_region
      %124 = dma.done [#allocation10], 1024
    $region57: #{tpu_custom_call.1} parent=1 // pred_fallthru
      _
    // Predicated region
    $region58: #{tpu_custom_call.1} parent=1 // pred_check
      _
    $region59: #{tpu_custom_call.1} parent=1 // pred_check_branch
      %126 = sbr.rel (0) target = $region61
    $region60: #{tpu_custom_call.1} parent=1 // pred_region
      %127 = dma.done [#allocation10], 1024
    $region61: #{tpu_custom_call.1} parent=1 // pred_fallthru
      _
    // Predicated region
    $region62: #{tpu_custom_call.1} parent=1 // pred_check
      _
    $region63: #{tpu_custom_call.1} parent=1 // pred_check_branch
      %129 = sbr.rel (0) target = $region65
    $region64: #{tpu_custom_call.1} parent=1 // pred_region
      %130 = dma.done [#allocation13], 1024
    $region65: #{tpu_custom_call.1} parent=1 // pred_fallthru
      _
    // Predicated region
    $region66: #{tpu_custom_call.1} parent=1 // pred_check
      _
    $region67: #{tpu_custom_call.1} parent=1 // pred_check_branch
      %132 = sbr.rel (0) target = $region69
    $region68: #{tpu_custom_call.1} parent=1 // pred_region
      %133 = dma.done [#allocation13], 1024
    $region69: #{tpu_custom_call.1} parent=1 // pred_fallthru
      _
    %v135 = vld [vmem:[#allocation14] sm:$0xf]
    %v136 = vld [vmem:[#allocation14 + $0x4] sm:$0xf]
    %v137 = vld [vmem:[#allocation14 + $0x8] sm:$0xf]
    %v138 = vld [vmem:[#allocation14 + $0xc] sm:$0xf]
    %v139 = vld [vmem:[#allocation14 + $0x10] sm:$0xf]
    %v140 = vld [vmem:[#allocation14 + $0x14] sm:$0xf]
    %v141 = vld [vmem:[#allocation14 + $0x18] sm:$0xf]
    %v142 = vld [vmem:[#allocation14 + $0x1c] sm:$0xf]
    %v143 = vld [vmem:[#allocation14 + $0x20] sm:$0xf]
    %v144 = vld [vmem:[#allocation14 + $0x24] sm:$0xf]
    %v145 = vld [vmem:[#allocation14 + $0x28] sm:$0xf]
    %v146 = vld [vmem:[#allocation14 + $0x2c] sm:$0xf]
    %v147 = vld [vmem:[#allocation14 + $0x30] sm:$0xf]
    %v148 = vld [vmem:[#allocation14 + $0x34] sm:$0xf]
    %v149 = vld [vmem:[#allocation14 + $0x38] sm:$0xf]
    %v150 = vld [vmem:[#allocation14 + $0x3c] sm:$0xf]
    %v151 = vld [vmem:[%s9] sm:$0x1]
    %v152 = vld [vmem:[#allocation3] sm:$0xf]
    %v153 = vld [vmem:[#allocation3 + $0x4] sm:$0xf]
    %v154 = vld [vmem:[#allocation3 + $0x8] sm:$0xf]
    %v155 = vld [vmem:[#allocation3 + $0xc] sm:$0xf]
    %v156 = vld [vmem:[#allocation3 + $0x10] sm:$0xf]
    %v157 = vld [vmem:[#allocation3 + $0x14] sm:$0xf]
    %v158 = vld [vmem:[#allocation3 + $0x18] sm:$0xf]
    %v159 = vld [vmem:[#allocation3 + $0x1c] sm:$0xf]
    %v160 = vld [vmem:[#allocation8] sm:$0xf]
    %v161 = vld [vmem:[#allocation8 + $0x4] sm:$0xf]
    %v162 = vld [vmem:[#allocation8 + $0x8] sm:$0xf]
    %v163 = vld [vmem:[#allocation8 + $0xc] sm:$0xf]
    %v164 = vld [vmem:[#allocation8 + $0x10] sm:$0xf]
    %v165 = vld [vmem:[#allocation8 + $0x14] sm:$0xf]
    %v166 = vld [vmem:[#allocation8 + $0x18] sm:$0xf]
    %v167 = vld [vmem:[#allocation8 + $0x1c] sm:$0xf]
    %v168 = vld [vmem:[#allocation8 + $0x20] sm:$0xf]
    %v169 = vld [vmem:[#allocation8 + $0x24] sm:$0xf]
    %v170 = vld [vmem:[#allocation8 + $0x28] sm:$0xf]
    %v171 = vld [vmem:[#allocation8 + $0x2c] sm:$0xf]
    %v172 = vld [vmem:[#allocation8 + $0x30] sm:$0xf]
    %v173 = vld [vmem:[#allocation8 + $0x34] sm:$0xf]
    %v174 = vld [vmem:[#allocation8 + $0x38] sm:$0xf]
    %v175 = vld [vmem:[#allocation8 + $0x3c] sm:$0xf]
    %v176 = vld [vmem:[%s4] sm:$0x1]
    %v178 = vlaneseq
    %v179 = vshrl.u32 %v178, 7
    %v180 = vsub.s32 0, %v179
    %v181 = vrot.slane %v176, %v180
    %v191 = vunpack.c.l.b16 %v152
    %v192 = vunpack.c.l.b16 %v153
    %v193 = vunpack.c.l.b16 %v154
    %v194 = vunpack.c.l.b16 %v155
    %v195 = vunpack.c.l.b16 %v156
    %v196 = vunpack.c.l.b16 %v157
    %v197 = vunpack.c.l.b16 %v158
    %v198 = vunpack.c.l.b16 %v159
    %v199 = vpack.c.b16 %v192, %v191
    %v200 = vpack.c.b16 %v194, %v193
    %v201 = vpack.c.b16 %v196, %v195
    %v202 = vpack.c.b16 %v198, %v197
    %v223 = vunpack.c.l.b16 %v160
    %v224 = vunpack.c.l.b16 %v161
    %v225 = vunpack.c.l.b16 %v162
    %v226 = vunpack.c.l.b16 %v163
    %v227 = vunpack.c.l.b16 %v164
    %v228 = vunpack.c.l.b16 %v165
    %v229 = vunpack.c.l.b16 %v166
    %v230 = vunpack.c.l.b16 %v167
    %v231 = vunpack.c.l.b16 %v168
    %v232 = vunpack.c.l.b16 %v169
    %v233 = vunpack.c.l.b16 %v170
    %v234 = vunpack.c.l.b16 %v171
    %v235 = vunpack.c.l.b16 %v172
    %v236 = vunpack.c.l.b16 %v173
    %v237 = vunpack.c.l.b16 %v174
    %v238 = vunpack.c.l.b16 %v175
    %v239 = vpack.c.b16 %v224, %v223
    %v240 = vpack.c.b16 %v226, %v225
    %v241 = vpack.c.b16 %v228, %v227
    %v242 = vpack.c.b16 %v230, %v229
    %v243 = vpack.c.b16 %v232, %v231
    %v244 = vpack.c.b16 %v234, %v233
    %v245 = vpack.c.b16 %v236, %v235
    %v246 = vpack.c.b16 %v238, %v237
    %255 = vmatprep.subr.bf16.mxu0 0
    %256 = vmatpush1.bf16.msra.mxu0 %v239
    %257 = vmatprep.subr.bf16.mxu0 0
    %258 = vmatpush1.bf16.msra.mxu0 %v240
    %259 = vmatprep.subr.bf16.mxu0 0
    %260 = vmatpush1.bf16.msra.mxu0 %v241
    %261 = vmatprep.subr.bf16.mxu0 0
    %262 = vmatpush1.bf16.msra.mxu0 %v242
    %263 = vmatprep.subr.bf16.mxu0 0
    %264 = vmatpush1.bf16.msra.mxu0 %v243
    %265 = vmatprep.subr.bf16.mxu0 0
    %266 = vmatpush1.bf16.msra.mxu0 %v244
    %267 = vmatprep.subr.bf16.mxu0 0
    %268 = vmatpush1.bf16.msra.mxu0 %v245
    %269 = vmatprep.subr.bf16.mxu0 0
    %270 = vmatpush1.bf16.msra.mxu0 %v246
    %271 = vmatprep.subr.bf16.mxu0 0
    %272 = vmatpush1.bf16.msra.mxu0 0
    %273 = vmatprep.subr.bf16.mxu0 0
    %274 = vmatpush1.bf16.msra.mxu0 0
    %275 = vmatprep.subr.bf16.mxu0 0
    %276 = vmatpush1.bf16.msra.mxu0 0
    %277 = vmatprep.subr.bf16.mxu0 0
    %278 = vmatpush1.bf16.msra.mxu0 0
    %279 = vmatprep.subr.bf16.mxu0 0
    %280 = vmatpush1.bf16.msra.mxu0 0
    %281 = vmatprep.subr.bf16.mxu0 0
    %282 = vmatpush1.bf16.msra.mxu0 0
    %283 = vmatprep.subr.bf16.mxu0 0
    %284 = vmatpush1.bf16.msra.mxu0 0
    %285 = vmatprep.subr.bf16.mxu0 0
    %286 = vmatpush1.bf16.msra.mxu0 0
    %287 = vmatprep.mubr.bf16.mxu0 0
    %288 = vmatmul.mubr.bf16.gmra.mrb[0].mxu0 %v199
    %v289 = vpop.f32.mrb[0].mxu0
    %v290 = vadd.f32 %v181, %v289
    %v291 = vpop.f32.mrb[0].mxu0
    %v292 = vpop.f32.mrb[0].mxu0
    %v293 = vadd.f32 %v181, %v292
    %v294 = vpop.f32.mrb[0].mxu0
    %295 = vmatprep.mubr.bf16.mxu0 0
    %296 = vmatmul.mubr.bf16.gmra.mrb[0].mxu0 %v200
    %v297 = vpop.f32.mrb[0].mxu0
    %v298 = vadd.f32 %v181, %v297
    %v299 = vpop.f32.mrb[0].mxu0
    %v300 = vpop.f32.mrb[0].mxu0
    %v301 = vadd.f32 %v181, %v300
    %v302 = vpop.f32.mrb[0].mxu0
    %303 = vmatprep.mubr.bf16.mxu0 0
    %304 = vmatmul.mubr.bf16.gmra.mrb[0].mxu0 %v201
    %v305 = vpop.f32.mrb[0].mxu0
    %v306 = vadd.f32 %v181, %v305
    %v307 = vpop.f32.mrb[0].mxu0
    %v308 = vpop.f32.mrb[0].mxu0
    %v309 = vadd.f32 %v181, %v308
    %v310 = vpop.f32.mrb[0].mxu0
    %311 = vmatprep.mubr.bf16.mxu0 0
    %312 = vmatmul.mubr.bf16.gmra.mrb[0].mxu0 %v202
    %v313 = vpop.f32.mrb[0].mxu0
    %v314 = vadd.f32 %v181, %v313
    %v315 = vpop.f32.mrb[0].mxu0
    %v316 = vpop.f32.mrb[0].mxu0
    %v317 = vadd.f32 %v181, %v316
    %v318 = vpop.f32.mrb[0].mxu0
    %319 = vdwg.mxu0
    %320 = vst [vmem:[#allocation2] sm:$0xff] %v290
    %321 = vst [vmem:[#allocation2 + $0x8] sm:$0xff] %v293
    %322 = vst [vmem:[#allocation2 + $0x10] sm:$0xff] %v298
    %323 = vst [vmem:[#allocation2 + $0x18] sm:$0xff] %v301
    %324 = vst [vmem:[#allocation2 + $0x20] sm:$0xff] %v306
    %325 = vst [vmem:[#allocation2 + $0x28] sm:$0xff] %v309
    %326 = vst [vmem:[#allocation2 + $0x30] sm:$0xff] %v314
    %327 = vst [vmem:[#allocation2 + $0x38] sm:$0xff] %v317
    %v328 = vld [vmem:[#allocation9] sm:$0xf]
    %v329 = vld [vmem:[#allocation9 + $0x4] sm:$0xf]
    %v330 = vld [vmem:[#allocation9 + $0x8] sm:$0xf]
    %v331 = vld [vmem:[#allocation9 + $0xc] sm:$0xf]
    %v332 = vld [vmem:[#allocation9 + $0x10] sm:$0xf]
    %v333 = vld [vmem:[#allocation9 + $0x14] sm:$0xf]
    %v334 = vld [vmem:[#allocation9 + $0x18] sm:$0xf]
    %v335 = vld [vmem:[#allocation9 + $0x1c] sm:$0xf]
    %v336 = vld [vmem:[#allocation9 + $0x20] sm:$0xf]
    %v337 = vld [vmem:[#allocation9 + $0x24] sm:$0xf]
    %v338 = vld [vmem:[#allocation9 + $0x28] sm:$0xf]
    %v339 = vld [vmem:[#allocation9 + $0x2c] sm:$0xf]
    %v340 = vld [vmem:[#allocation9 + $0x30] sm:$0xf]
    %v341 = vld [vmem:[#allocation9 + $0x34] sm:$0xf]
    %v342 = vld [vmem:[#allocation9 + $0x38] sm:$0xf]
    %v343 = vld [vmem:[#allocation9 + $0x3c] sm:$0xf]
    %v344 = vld [vmem:[#allocation11] sm:$0xf]
    %v345 = vld [vmem:[#allocation11 + $0x4] sm:$0xf]
    %v346 = vld [vmem:[#allocation11 + $0x8] sm:$0xf]
    %v347 = vld [vmem:[#allocation11 + $0xc] sm:$0xf]
    %v348 = vld [vmem:[#allocation11 + $0x10] sm:$0xf]
    %v349 = vld [vmem:[#allocation11 + $0x14] sm:$0xf]
    %v350 = vld [vmem:[#allocation11 + $0x18] sm:$0xf]
    %v351 = vld [vmem:[#allocation11 + $0x1c] sm:$0xf]
    %v352 = vld [vmem:[#allocation11 + $0x20] sm:$0xf]
    %v353 = vld [vmem:[#allocation11 + $0x24] sm:$0xf]
    %v354 = vld [vmem:[#allocation11 + $0x28] sm:$0xf]
    %v355 = vld [vmem:[#allocation11 + $0x2c] sm:$0xf]
    %v356 = vld [vmem:[#allocation11 + $0x30] sm:$0xf]
    %v357 = vld [vmem:[#allocation11 + $0x34] sm:$0xf]
    %v358 = vld [vmem:[#allocation11 + $0x38] sm:$0xf]
    %v359 = vld [vmem:[#allocation11 + $0x3c] sm:$0xf]
    %v360 = vld [vmem:[%s7] sm:$0x1]
    %v361 = vld [vmem:[#allocation6] sm:$0xff]
    %v362 = vld [vmem:[#allocation2] sm:$0xff]
    %v363 = vpack.c.bf16 %v361, %v361
    %v380 = vunpack.c.l.b16 %v328
    %v381 = vunpack.c.l.b16 %v329
    %v382 = vunpack.c.l.b16 %v330
    %v383 = vunpack.c.l.b16 %v331
    %v384 = vunpack.c.l.b16 %v332
    %v385 = vunpack.c.l.b16 %v333
    %v386 = vunpack.c.l.b16 %v334
    %v387 = vunpack.c.l.b16 %v335
    %v388 = vunpack.c.l.b16 %v336
    %v389 = vunpack.c.l.b16 %v337
    %v390 = vunpack.c.l.b16 %v338
    %v391 = vunpack.c.l.b16 %v339
    %v392 = vunpack.c.l.b16 %v340
    %v393 = vunpack.c.l.b16 %v341
    %v394 = vunpack.c.l.b16 %v342
    %v395 = vunpack.c.l.b16 %v343
    %v396 = vpack.c.b16 %v381, %v380
    %v397 = vpack.c.b16 %v383, %v382
    %v398 = vpack.c.b16 %v385, %v384
    %v399 = vpack.c.b16 %v387, %v386
    %v400 = vpack.c.b16 %v389, %v388
    %v401 = vpack.c.b16 %v391, %v390
    %v402 = vpack.c.b16 %v393, %v392
    %v403 = vpack.c.b16 %v395, %v394
    %412 = vmatprep.subr.bf16.mxu0 0
    %413 = vmatpush1.bf16.msra.mxu0 %v396
    %414 = vmatprep.subr.bf16.mxu0 0
    %415 = vmatpush1.bf16.msra.mxu0 %v397
    %416 = vmatprep.subr.bf16.mxu0 0
    %417 = vmatpush1.bf16.msra.mxu0 %v398
    %418 = vmatprep.subr.bf16.mxu0 0
    %419 = vmatpush1.bf16.msra.mxu0 %v399
    %420 = vmatprep.subr.bf16.mxu0 0
    %421 = vmatpush1.bf16.msra.mxu0 %v400
    %422 = vmatprep.subr.bf16.mxu0 0
    %423 = vmatpush1.bf16.msra.mxu0 %v401
    %424 = vmatprep.subr.bf16.mxu0 0
    %425 = vmatpush1.bf16.msra.mxu0 %v402
    %426 = vmatprep.subr.bf16.mxu0 0
    %427 = vmatpush1.bf16.msra.mxu0 %v403
    %428 = vmatprep.subr.bf16.mxu0 0
    %429 = vmatpush1.bf16.msra.mxu0 0
    %430 = vmatprep.subr.bf16.mxu0 0
    %431 = vmatpush1.bf16.msra.mxu0 0
    %432 = vmatprep.subr.bf16.mxu0 0
    %433 = vmatpush1.bf16.msra.mxu0 0
    %434 = vmatprep.subr.bf16.mxu0 0
    %435 = vmatpush1.bf16.msra.mxu0 0
    %436 = vmatprep.subr.bf16.mxu0 0
    %437 = vmatpush1.bf16.msra.mxu0 0
    %438 = vmatprep.subr.bf16.mxu0 0
    %439 = vmatpush1.bf16.msra.mxu0 0
    %440 = vmatprep.subr.bf16.mxu0 0
    %441 = vmatpush1.bf16.msra.mxu0 0
    %442 = vmatprep.subr.bf16.mxu0 0
    %443 = vmatpush1.bf16.msra.mxu0 0
    %444 = vmatprep.mubr.bf16.mxu0 0
    %445 = vmatmul.mubr.bf16.gmra.mrb[0].mxu0 %v363
    %v446 = vpop.f32.mrb[0].mxu0
    %v447 = vadd.f32 0.0, %v446
    %v448 = vpop.f32.mrb[0].mxu0
    %v449 = vpop.f32.mrb[0].mxu0
    %v450 = vpop.f32.mrb[0].mxu0
    %451 = vdwg.mxu0
    %v452 = vadd.f32 %v362, %v447
    %v453 = vmax.f32 %v452, 0.0
    %v454 = vpack.c.bf16 %v453, %v453
    %v456 = vlaneseq
    %v457 = vshrl.u32 %v456, 7
    %v458 = vsub.s32 0, %v457
    %v459 = vrot.slane %v360, %v458
    %v477 = vunpack.c.l.b16 %v344
    %v478 = vunpack.c.l.b16 %v345
    %v479 = vunpack.c.l.b16 %v346
    %v480 = vunpack.c.l.b16 %v347
    %v481 = vunpack.c.l.b16 %v348
    %v482 = vunpack.c.l.b16 %v349
    %v483 = vunpack.c.l.b16 %v350
    %v484 = vunpack.c.l.b16 %v351
    %v485 = vunpack.c.l.b16 %v352
    %v486 = vunpack.c.l.b16 %v353
    %v487 = vunpack.c.l.b16 %v354
    %v488 = vunpack.c.l.b16 %v355
    %v489 = vunpack.c.l.b16 %v356
    %v490 = vunpack.c.l.b16 %v357
    %v491 = vunpack.c.l.b16 %v358
    %v492 = vunpack.c.l.b16 %v359
    %v493 = vpack.c.b16 %v478, %v477
    %v494 = vpack.c.b16 %v480, %v479
    %v495 = vpack.c.b16 %v482, %v481
    %v496 = vpack.c.b16 %v484, %v483
    %v497 = vpack.c.b16 %v486, %v485
    %v498 = vpack.c.b16 %v488, %v487
    %v499 = vpack.c.b16 %v490, %v489
    %v500 = vpack.c.b16 %v492, %v491
    %509 = vmatprep.subr.bf16.mxu0 0
    %510 = vmatpush1.bf16.msra.mxu0 %v493
    %511 = vmatprep.subr.bf16.mxu0 0
    %512 = vmatpush1.bf16.msra.mxu0 %v494
    %513 = vmatprep.subr.bf16.mxu0 0
    %514 = vmatpush1.bf16.msra.mxu0 %v495
    %515 = vmatprep.subr.bf16.mxu0 0
    %516 = vmatpush1.bf16.msra.mxu0 %v496
    %517 = vmatprep.subr.bf16.mxu0 0
    %518 = vmatpush1.bf16.msra.mxu0 %v497
    %519 = vmatprep.subr.bf16.mxu0 0
    %520 = vmatpush1.bf16.msra.mxu0 %v498
    %521 = vmatprep.subr.bf16.mxu0 0
    %522 = vmatpush1.bf16.msra.mxu0 %v499
    %523 = vmatprep.subr.bf16.mxu0 0
    %524 = vmatpush1.bf16.msra.mxu0 %v500
    %525 = vmatprep.subr.bf16.mxu0 0
    %526 = vmatpush1.bf16.msra.mxu0 0
    %527 = vmatprep.subr.bf16.mxu0 0
    %528 = vmatpush1.bf16.msra.mxu0 0
    %529 = vmatprep.subr.bf16.mxu0 0
    %530 = vmatpush1.bf16.msra.mxu0 0
    %531 = vmatprep.subr.bf16.mxu0 0
    %532 = vmatpush1.bf16.msra.mxu0 0
    %533 = vmatprep.subr.bf16.mxu0 0
    %534 = vmatpush1.bf16.msra.mxu0 0
    %535 = vmatprep.subr.bf16.mxu0 0
    %536 = vmatpush1.bf16.msra.mxu0 0
    %537 = vmatprep.subr.bf16.mxu0 0
    %538 = vmatpush1.bf16.msra.mxu0 0
    %539 = vmatprep.subr.bf16.mxu0 0
    %540 = vmatpush1.bf16.msra.mxu0 0
    %541 = vmatprep.mubr.bf16.mxu0 0
    %542 = vmatmul.mubr.bf16.gmra.mrb[0].mxu0 %v454
    %v543 = vpop.f32.mrb[0].mxu0
    %v544 = vadd.f32 %v459, %v543
    %v545 = vpop.f32.mrb[0].mxu0
    %v546 = vpop.f32.mrb[0].mxu0
    %v547 = vpop.f32.mrb[0].mxu0
    %548 = vdwg.mxu0
    %549 = vst [vmem:[#allocation2] sm:$0xff] %v544
    %v550 = vld [vmem:[#allocation2 + $0x8] sm:$0xff]
    %551 = vmatprep.subr.bf16.mxu0 0
    %552 = vmatpush1.bf16.msra.mxu0 %v396
    %553 = vmatprep.subr.bf16.mxu0 0
    %554 = vmatpush1.bf16.msra.mxu0 %v397
    %555 = vmatprep.subr.bf16.mxu0 0
    %556 = vmatpush1.bf16.msra.mxu0 %v398
    %557 = vmatprep.subr.bf16.mxu0 0
    %558 = vmatpush1.bf16.msra.mxu0 %v399
    %559 = vmatprep.subr.bf16.mxu0 0
    %560 = vmatpush1.bf16.msra.mxu0 %v400
    %561 = vmatprep.subr.bf16.mxu0 0
    %562 = vmatpush1.bf16.msra.mxu0 %v401
    %563 = vmatprep.subr.bf16.mxu0 0
    %564 = vmatpush1.bf16.msra.mxu0 %v402
    %565 = vmatprep.subr.bf16.mxu0 0
    %566 = vmatpush1.bf16.msra.mxu0 %v403
    %567 = vmatprep.subr.bf16.mxu0 0
    %568 = vmatpush1.bf16.msra.mxu0 0
    %569 = vmatprep.subr.bf16.mxu0 0
    %570 = vmatpush1.bf16.msra.mxu0 0
    %571 = vmatprep.subr.bf16.mxu0 0
    %572 = vmatpush1.bf16.msra.mxu0 0
    %573 = vmatprep.subr.bf16.mxu0 0
    %574 = vmatpush1.bf16.msra.mxu0 0
    %575 = vmatprep.subr.bf16.mxu0 0
    %576 = vmatpush1.bf16.msra.mxu0 0
    %577 = vmatprep.subr.bf16.mxu0 0
    %578 = vmatpush1.bf16.msra.mxu0 0
    %579 = vmatprep.subr.bf16.mxu0 0
    %580 = vmatpush1.bf16.msra.mxu0 0
    %581 = vmatprep.subr.bf16.mxu0 0
    %582 = vmatpush1.bf16.msra.mxu0 0
    %583 = vmatprep.mubr.bf16.mxu0 0
    %584 = vmatmul.mubr.bf16.gmra.mrb[0].mxu0 %v454
    %v585 = vpop.f32.mrb[0].mxu0
    %v586 = vadd.f32 0.0, %v585
    %v587 = vpop.f32.mrb[0].mxu0
    %v588 = vpop.f32.mrb[0].mxu0
    %v589 = vpop.f32.mrb[0].mxu0
    %590 = vdwg.mxu0
    %v591 = vadd.f32 %v550, %v586
    %v592 = vmax.f32 %v591, 0.0
    %v593 = vpack.c.bf16 %v592, %v592
    %594 = vmatprep.subr.bf16.mxu0 0
    %595 = vmatpush1.bf16.msra.mxu0 %v493
    %596 = vmatprep.subr.bf16.mxu0 0
    %597 = vmatpush1.bf16.msra.mxu0 %v494
    %598 = vmatprep.subr.bf16.mxu0 0
    %599 = vmatpush1.bf16.msra.mxu0 %v495
    %600 = vmatprep.subr.bf16.mxu0 0
    %601 = vmatpush1.bf16.msra.mxu0 %v496
    %602 = vmatprep.subr.bf16.mxu0 0
    %603 = vmatpush1.bf16.msra.mxu0 %v497
    %604 = vmatprep.subr.bf16.mxu0 0
    %605 = vmatpush1.bf16.msra.mxu0 %v498
    %606 = vmatprep.subr.bf16.mxu0 0
    %607 = vmatpush1.bf16.msra.mxu0 %v499
    %608 = vmatprep.subr.bf16.mxu0 0
    %609 = vmatpush1.bf16.msra.mxu0 %v500
    %610 = vmatprep.subr.bf16.mxu0 0
    %611 = vmatpush1.bf16.msra.mxu0 0
    %612 = vmatprep.subr.bf16.mxu0 0
    %613 = vmatpush1.bf16.msra.mxu0 0
    %614 = vmatprep.subr.bf16.mxu0 0
    %615 = vmatpush1.bf16.msra.mxu0 0
    %616 = vmatprep.subr.bf16.mxu0 0
    %617 = vmatpush1.bf16.msra.mxu0 0
    %618 = vmatprep.subr.bf16.mxu0 0
    %619 = vmatpush1.bf16.msra.mxu0 0
    %620 = vmatprep.subr.bf16.mxu0 0
    %621 = vmatpush1.bf16.msra.mxu0 0
    %622 = vmatprep.subr.bf16.mxu0 0
    %623 = vmatpush1.bf16.msra.mxu0 0
    %624 = vmatprep.subr.bf16.mxu0 0
    %625 = vmatpush1.bf16.msra.mxu0 0
    %626 = vmatprep.mubr.bf16.mxu0 0
    %627 = vmatmul.mubr.bf16.gmra.mrb[0].mxu0 %v593
    %v628 = vpop.f32.mrb[0].mxu0
    %v629 = vadd.f32 %v459, %v628
    %v630 = vpop.f32.mrb[0].mxu0
    %v631 = vpop.f32.mrb[0].mxu0
    %v632 = vpop.f32.mrb[0].mxu0
    %633 = vdwg.mxu0
    %634 = vst [vmem:[#allocation2 + $0x8] sm:$0xff] %v629
    %v635 = vld [vmem:[#allocation2 + $0x10] sm:$0xff]
    %636 = vmatprep.subr.bf16.mxu0 0
    %637 = vmatpush1.bf16.msra.mxu0 %v396
    %638 = vmatprep.subr.bf16.mxu0 0
    %639 = vmatpush1.bf16.msra.mxu0 %v397
    %640 = vmatprep.subr.bf16.mxu0 0
    %641 = vmatpush1.bf16.msra.mxu0 %v398
    %642 = vmatprep.subr.bf16.mxu0 0
    %643 = vmatpush1.bf16.msra.mxu0 %v399
    %644 = vmatprep.subr.bf16.mxu0 0
    %645 = vmatpush1.bf16.msra.mxu0 %v400
    %646 = vmatprep.subr.bf16.mxu0 0
    %647 = vmatpush1.bf16.msra.mxu0 %v401
    %648 = vmatprep.subr.bf16.mxu0 0
    %649 = vmatpush1.bf16.msra.mxu0 %v402
    %650 = vmatprep.subr.bf16.mxu0 0
    %651 = vmatpush1.bf16.msra.mxu0 %v403
    %652 = vmatprep.subr.bf16.mxu0 0
    %653 = vmatpush1.bf16.msra.mxu0 0
    %654 = vmatprep.subr.bf16.mxu0 0
    %655 = vmatpush1.bf16.msra.mxu0 0
    %656 = vmatprep.subr.bf16.mxu0 0
    %657 = vmatpush1.bf16.msra.mxu0 0
    %658 = vmatprep.subr.bf16.mxu0 0
    %659 = vmatpush1.bf16.msra.mxu0 0
    %660 = vmatprep.subr.bf16.mxu0 0
    %661 = vmatpush1.bf16.msra.mxu0 0
    %662 = vmatprep.subr.bf16.mxu0 0
    %663 = vmatpush1.bf16.msra.mxu0 0
    %664 = vmatprep.subr.bf16.mxu0 0
    %665 = vmatpush1.bf16.msra.mxu0 0
    %666 = vmatprep.subr.bf16.mxu0 0
    %667 = vmatpush1.bf16.msra.mxu0 0
    %668 = vmatprep.mubr.bf16.mxu0 0
    %669 = vmatmul.mubr.bf16.gmra.mrb[0].mxu0 %v593
    %v670 = vpop.f32.mrb[0].mxu0
    %v671 = vadd.f32 0.0, %v670
    %v672 = vpop.f32.mrb[0].mxu0
    %v673 = vpop.f32.mrb[0].mxu0
    %v674 = vpop.f32.mrb[0].mxu0
    %675 = vdwg.mxu0
    %v676 = vadd.f32 %v635, %v671
    %v677 = vmax.f32 %v676, 0.0
    %v678 = vpack.c.bf16 %v677, %v677
    %679 = vmatprep.subr.bf16.mxu0 0
    %680 = vmatpush1.bf16.msra.mxu0 %v493
    %681 = vmatprep.subr.bf16.mxu0 0
    %682 = vmatpush1.bf16.msra.mxu0 %v494
    %683 = vmatprep.subr.bf16.mxu0 0
    %684 = vmatpush1.bf16.msra.mxu0 %v495
    %685 = vmatprep.subr.bf16.mxu0 0
    %686 = vmatpush1.bf16.msra.mxu0 %v496
    %687 = vmatprep.subr.bf16.mxu0 0
    %688 = vmatpush1.bf16.msra.mxu0 %v497
    %689 = vmatprep.subr.bf16.mxu0 0
    %690 = vmatpush1.bf16.msra.mxu0 %v498
    %691 = vmatprep.subr.bf16.mxu0 0
    %692 = vmatpush1.bf16.msra.mxu0 %v499
    %693 = vmatprep.subr.bf16.mxu0 0
    %694 = vmatpush1.bf16.msra.mxu0 %v500
    %695 = vmatprep.subr.bf16.mxu0 0
    %696 = vmatpush1.bf16.msra.mxu0 0
    %697 = vmatprep.subr.bf16.mxu0 0
    %698 = vmatpush1.bf16.msra.mxu0 0
    %699 = vmatprep.subr.bf16.mxu0 0
    %700 = vmatpush1.bf16.msra.mxu0 0
    %701 = vmatprep.subr.bf16.mxu0 0
    %702 = vmatpush1.bf16.msra.mxu0 0
    %703 = vmatprep.subr.bf16.mxu0 0
    %704 = vmatpush1.bf16.msra.mxu0 0
    %705 = vmatprep.subr.bf16.mxu0 0
    %706 = vmatpush1.bf16.msra.mxu0 0
    %707 = vmatprep.subr.bf16.mxu0 0
    %708 = vmatpush1.bf16.msra.mxu0 0
    %709 = vmatprep.subr.bf16.mxu0 0
    %710 = vmatpush1.bf16.msra.mxu0 0
    %711 = vmatprep.mubr.bf16.mxu0 0
    %712 = vmatmul.mubr.bf16.gmra.mrb[0].mxu0 %v678
    %v713 = vpop.f32.mrb[0].mxu0
    %v714 = vadd.f32 %v459, %v713
    %v715 = vpop.f32.mrb[0].mxu0
    %v716 = vpop.f32.mrb[0].mxu0
    %v717 = vpop.f32.mrb[0].mxu0
    %718 = vdwg.mxu0
    %719 = vst [vmem:[#allocation2 + $0x10] sm:$0xff] %v714
    %v720 = vld [vmem:[#allocation2 + $0x18] sm:$0xff]
    %721 = vmatprep.subr.bf16.mxu0 0
    %722 = vmatpush1.bf16.msra.mxu0 %v396
    %723 = vmatprep.subr.bf16.mxu0 0
    %724 = vmatpush1.bf16.msra.mxu0 %v397
    %725 = vmatprep.subr.bf16.mxu0 0
    %726 = vmatpush1.bf16.msra.mxu0 %v398
    %727 = vmatprep.subr.bf16.mxu0 0
    %728 = vmatpush1.bf16.msra.mxu0 %v399
    %729 = vmatprep.subr.bf16.mxu0 0
    %730 = vmatpush1.bf16.msra.mxu0 %v400
    %731 = vmatprep.subr.bf16.mxu0 0
    %732 = vmatpush1.bf16.msra.mxu0 %v401
    %733 = vmatprep.subr.bf16.mxu0 0
    %734 = vmatpush1.bf16.msra.mxu0 %v402
    %735 = vmatprep.subr.bf16.mxu0 0
    %736 = vmatpush1.bf16.msra.mxu0 %v403
    %737 = vmatprep.subr.bf16.mxu0 0
    %738 = vmatpush1.bf16.msra.mxu0 0
    %739 = vmatprep.subr.bf16.mxu0 0
    %740 = vmatpush1.bf16.msra.mxu0 0
    %741 = vmatprep.subr.bf16.mxu0 0
    %742 = vmatpush1.bf16.msra.mxu0 0
    %743 = vmatprep.subr.bf16.mxu0 0
    %744 = vmatpush1.bf16.msra.mxu0 0
    %745 = vmatprep.subr.bf16.mxu0 0
    %746 = vmatpush1.bf16.msra.mxu0 0
    %747 = vmatprep.subr.bf16.mxu0 0
    %748 = vmatpush1.bf16.msra.mxu0 0
    %749 = vmatprep.subr.bf16.mxu0 0
    %750 = vmatpush1.bf16.msra.mxu0 0
    %751 = vmatprep.subr.bf16.mxu0 0
    %752 = vmatpush1.bf16.msra.mxu0 0
    %753 = vmatprep.mubr.bf16.mxu0 0
    %754 = vmatmul.mubr.bf16.gmra.mrb[0].mxu0 %v678
    %v755 = vpop.f32.mrb[0].mxu0
    %v756 = vadd.f32 0.0, %v755
    %v757 = vpop.f32.mrb[0].mxu0
    %v758 = vpop.f32.mrb[0].mxu0
    %v759 = vpop.f32.mrb[0].mxu0
    %760 = vdwg.mxu0
    %v761 = vadd.f32 %v720, %v756
    %v762 = vmax.f32 %v761, 0.0
    %v763 = vpack.c.bf16 %v762, %v762
    %764 = vmatprep.subr.bf16.mxu0 0
    %765 = vmatpush1.bf16.msra.mxu0 %v493
    %766 = vmatprep.subr.bf16.mxu0 0
    %767 = vmatpush1.bf16.msra.mxu0 %v494
    %768 = vmatprep.subr.bf16.mxu0 0
    %769 = vmatpush1.bf16.msra.mxu0 %v495
    %770 = vmatprep.subr.bf16.mxu0 0
    %771 = vmatpush1.bf16.msra.mxu0 %v496
    %772 = vmatprep.subr.bf16.mxu0 0
    %773 = vmatpush1.bf16.msra.mxu0 %v497
    %774 = vmatprep.subr.bf16.mxu0 0
    %775 = vmatpush1.bf16.msra.mxu0 %v498
    %776 = vmatprep.subr.bf16.mxu0 0
    %777 = vmatpush1.bf16.msra.mxu0 %v499
    %778 = vmatprep.subr.bf16.mxu0 0
    %779 = vmatpush1.bf16.msra.mxu0 %v500
    %780 = vmatprep.subr.bf16.mxu0 0
    %781 = vmatpush1.bf16.msra.mxu0 0
    %782 = vmatprep.subr.bf16.mxu0 0
    %783 = vmatpush1.bf16.msra.mxu0 0
    %784 = vmatprep.subr.bf16.mxu0 0
    %785 = vmatpush1.bf16.msra.mxu0 0
    %786 = vmatprep.subr.bf16.mxu0 0
    %787 = vmatpush1.bf16.msra.mxu0 0
    %788 = vmatprep.subr.bf16.mxu0 0
    %789 = vmatpush1.bf16.msra.mxu0 0
    %790 = vmatprep.subr.bf16.mxu0 0
    %791 = vmatpush1.bf16.msra.mxu0 0
    %792 = vmatprep.subr.bf16.mxu0 0
    %793 = vmatpush1.bf16.msra.mxu0 0
    %794 = vmatprep.subr.bf16.mxu0 0
    %795 = vmatpush1.bf16.msra.mxu0 0
    %796 = vmatprep.mubr.bf16.mxu0 0
    %797 = vmatmul.mubr.bf16.gmra.mrb[0].mxu0 %v763
    %v798 = vpop.f32.mrb[0].mxu0
    %v799 = vadd.f32 %v459, %v798
    %v800 = vpop.f32.mrb[0].mxu0
    %v801 = vpop.f32.mrb[0].mxu0
    %v802 = vpop.f32.mrb[0].mxu0
    %803 = vdwg.mxu0
    %804 = vst [vmem:[#allocation2 + $0x18] sm:$0xff] %v799
    %v805 = vld [vmem:[#allocation2 + $0x20] sm:$0xff]
    %806 = vmatprep.subr.bf16.mxu0 0
    %807 = vmatpush1.bf16.msra.mxu0 %v396
    %808 = vmatprep.subr.bf16.mxu0 0
    %809 = vmatpush1.bf16.msra.mxu0 %v397
    %810 = vmatprep.subr.bf16.mxu0 0
    %811 = vmatpush1.bf16.msra.mxu0 %v398
    %812 = vmatprep.subr.bf16.mxu0 0
    %813 = vmatpush1.bf16.msra.mxu0 %v399
    %814 = vmatprep.subr.bf16.mxu0 0
    %815 = vmatpush1.bf16.msra.mxu0 %v400
    %816 = vmatprep.subr.bf16.mxu0 0
    %817 = vmatpush1.bf16.msra.mxu0 %v401
    %818 = vmatprep.subr.bf16.mxu0 0
    %819 = vmatpush1.bf16.msra.mxu0 %v402
    %820 = vmatprep.subr.bf16.mxu0 0
    %821 = vmatpush1.bf16.msra.mxu0 %v403
    %822 = vmatprep.subr.bf16.mxu0 0
    %823 = vmatpush1.bf16.msra.mxu0 0
    %824 = vmatprep.subr.bf16.mxu0 0
    %825 = vmatpush1.bf16.msra.mxu0 0
    %826 = vmatprep.subr.bf16.mxu0 0
    %827 = vmatpush1.bf16.msra.mxu0 0
    %828 = vmatprep.subr.bf16.mxu0 0
    %829 = vmatpush1.bf16.msra.mxu0 0
    %830 = vmatprep.subr.bf16.mxu0 0
    %831 = vmatpush1.bf16.msra.mxu0 0
    %832 = vmatprep.subr.bf16.mxu0 0
    %833 = vmatpush1.bf16.msra.mxu0 0
    %834 = vmatprep.subr.bf16.mxu0 0
    %835 = vmatpush1.bf16.msra.mxu0 0
    %836 = vmatprep.subr.bf16.mxu0 0
    %837 = vmatpush1.bf16.msra.mxu0 0
    %838 = vmatprep.mubr.bf16.mxu0 0
    %839 = vmatmul.mubr.bf16.gmra.mrb[0].mxu0 %v763
    %v840 = vpop.f32.mrb[0].mxu0
    %v841 = vadd.f32 0.0, %v840
    %v842 = vpop.f32.mrb[0].mxu0
    %v843 = vpop.f32.mrb[0].mxu0
    %v844 = vpop.f32.mrb[0].mxu0
    %845 = vdwg.mxu0
    %v846 = vadd.f32 %v805, %v841
    %v847 = vmax.f32 %v846, 0.0
    %v848 = vpack.c.bf16 %v847, %v847
    %849 = vmatprep.subr.bf16.mxu0 0
    %850 = vmatpush1.bf16.msra.mxu0 %v493
    %851 = vmatprep.subr.bf16.mxu0 0
    %852 = vmatpush1.bf16.msra.mxu0 %v494
    %853 = vmatprep.subr.bf16.mxu0 0
    %854 = vmatpush1.bf16.msra.mxu0 %v495
    %855 = vmatprep.subr.bf16.mxu0 0
    %856 = vmatpush1.bf16.msra.mxu0 %v496
    %857 = vmatprep.subr.bf16.mxu0 0
    %858 = vmatpush1.bf16.msra.mxu0 %v497
    %859 = vmatprep.subr.bf16.mxu0 0
    %860 = vmatpush1.bf16.msra.mxu0 %v498
    %861 = vmatprep.subr.bf16.mxu0 0
    %862 = vmatpush1.bf16.msra.mxu0 %v499
    %863 = vmatprep.subr.bf16.mxu0 0
    %864 = vmatpush1.bf16.msra.mxu0 %v500
    %865 = vmatprep.subr.bf16.mxu0 0
    %866 = vmatpush1.bf16.msra.mxu0 0
    %867 = vmatprep.subr.bf16.mxu0 0
    %868 = vmatpush1.bf16.msra.mxu0 0
    %869 = vmatprep.subr.bf16.mxu0 0
    %870 = vmatpush1.bf16.msra.mxu0 0
    %871 = vmatprep.subr.bf16.mxu0 0
    %872 = vmatpush1.bf16.msra.mxu0 0
    %873 = vmatprep.subr.bf16.mxu0 0
    %874 = vmatpush1.bf16.msra.mxu0 0
    %875 = vmatprep.subr.bf16.mxu0 0
    %876 = vmatpush1.bf16.msra.mxu0 0
    %877 = vmatprep.subr.bf16.mxu0 0
    %878 = vmatpush1.bf16.msra.mxu0 0
    %879 = vmatprep.subr.bf16.mxu0 0
    %880 = vmatpush1.bf16.msra.mxu0 0
    %881 = vmatprep.mubr.bf16.mxu0 0
    %882 = vmatmul.mubr.bf16.gmra.mrb[0].mxu0 %v848
    %v883 = vpop.f32.mrb[0].mxu0
    %v884 = vadd.f32 %v459, %v883
    %v885 = vpop.f32.mrb[0].mxu0
    %v886 = vpop.f32.mrb[0].mxu0
    %v887 = vpop.f32.mrb[0].mxu0
    %888 = vdwg.mxu0
    %889 = vst [vmem:[#allocation2 + $0x20] sm:$0xff] %v884
    %v890 = vld [vmem:[#allocation2 + $0x28] sm:$0xff]
    %891 = vmatprep.subr.bf16.mxu0 0
    %892 = vmatpush1.bf16.msra.mxu0 %v396
    %893 = vmatprep.subr.bf16.mxu0 0
    %894 = vmatpush1.bf16.msra.mxu0 %v397
    %895 = vmatprep.subr.bf16.mxu0 0
    %896 = vmatpush1.bf16.msra.mxu0 %v398
    %897 = vmatprep.subr.bf16.mxu0 0
    %898 = vmatpush1.bf16.msra.mxu0 %v399
    %899 = vmatprep.subr.bf16.mxu0 0
    %900 = vmatpush1.bf16.msra.mxu0 %v400
    %901 = vmatprep.subr.bf16.mxu0 0
    %902 = vmatpush1.bf16.msra.mxu0 %v401
    %903 = vmatprep.subr.bf16.mxu0 0
    %904 = vmatpush1.bf16.msra.mxu0 %v402
    %905 = vmatprep.subr.bf16.mxu0 0
    %906 = vmatpush1.bf16.msra.mxu0 %v403
    %907 = vmatprep.subr.bf16.mxu0 0
    %908 = vmatpush1.bf16.msra.mxu0 0
    %909 = vmatprep.subr.bf16.mxu0 0
    %910 = vmatpush1.bf16.msra.mxu0 0
    %911 = vmatprep.subr.bf16.mxu0 0
    %912 = vmatpush1.bf16.msra.mxu0 0
    %913 = vmatprep.subr.bf16.mxu0 0
    %914 = vmatpush1.bf16.msra.mxu0 0
    %915 = vmatprep.subr.bf16.mxu0 0
    %916 = vmatpush1.bf16.msra.mxu0 0
    %917 = vmatprep.subr.bf16.mxu0 0
    %918 = vmatpush1.bf16.msra.mxu0 0
    %919 = vmatprep.subr.bf16.mxu0 0
    %920 = vmatpush1.bf16.msra.mxu0 0
    %921 = vmatprep.subr.bf16.mxu0 0
    %922 = vmatpush1.bf16.msra.mxu0 0
    %923 = vmatprep.mubr.bf16.mxu0 0
    %924 = vmatmul.mubr.bf16.gmra.mrb[0].mxu0 %v848
    %v925 = vpop.f32.mrb[0].mxu0
    %v926 = vadd.f32 0.0, %v925
    %v927 = vpop.f32.mrb[0].mxu0
    %v928 = vpop.f32.mrb[0].mxu0
    %v929 = vpop.f32.mrb[0].mxu0
    %930 = vdwg.mxu0
    %v931 = vadd.f32 %v890, %v926
    %v932 = vmax.f32 %v931, 0.0
    %v933 = vpack.c.bf16 %v932, %v932
    %934 = vmatprep.subr.bf16.mxu0 0
    %935 = vmatpush1.bf16.msra.mxu0 %v493
    %936 = vmatprep.subr.bf16.mxu0 0
    %937 = vmatpush1.bf16.msra.mxu0 %v494
    %938 = vmatprep.subr.bf16.mxu0 0
    %939 = vmatpush1.bf16.msra.mxu0 %v495
    %940 = vmatprep.subr.bf16.mxu0 0
    %941 = vmatpush1.bf16.msra.mxu0 %v496
    %942 = vmatprep.subr.bf16.mxu0 0
    %943 = vmatpush1.bf16.msra.mxu0 %v497
    %944 = vmatprep.subr.bf16.mxu0 0
    %945 = vmatpush1.bf16.msra.mxu0 %v498
    %946 = vmatprep.subr.bf16.mxu0 0
    %947 = vmatpush1.bf16.msra.mxu0 %v499
    %948 = vmatprep.subr.bf16.mxu0 0
    %949 = vmatpush1.bf16.msra.mxu0 %v500
    %950 = vmatprep.subr.bf16.mxu0 0
    %951 = vmatpush1.bf16.msra.mxu0 0
    %952 = vmatprep.subr.bf16.mxu0 0
    %953 = vmatpush1.bf16.msra.mxu0 0
    %954 = vmatprep.subr.bf16.mxu0 0
    %955 = vmatpush1.bf16.msra.mxu0 0
    %956 = vmatprep.subr.bf16.mxu0 0
    %957 = vmatpush1.bf16.msra.mxu0 0
    %958 = vmatprep.subr.bf16.mxu0 0
    %959 = vmatpush1.bf16.msra.mxu0 0
    %960 = vmatprep.subr.bf16.mxu0 0
    %961 = vmatpush1.bf16.msra.mxu0 0
    %962 = vmatprep.subr.bf16.mxu0 0
    %963 = vmatpush1.bf16.msra.mxu0 0
    %964 = vmatprep.subr.bf16.mxu0 0
    %965 = vmatpush1.bf16.msra.mxu0 0
    %966 = vmatprep.mubr.bf16.mxu0 0
    %967 = vmatmul.mubr.bf16.gmra.mrb[0].mxu0 %v933
    %v968 = vpop.f32.mrb[0].mxu0
    %v969 = vadd.f32 %v459, %v968
    %v970 = vpop.f32.mrb[0].mxu0
    %v971 = vpop.f32.mrb[0].mxu0
    %v972 = vpop.f32.mrb[0].mxu0
    %973 = vdwg.mxu0
    %974 = vst [vmem:[#allocation2 + $0x28] sm:$0xff] %v969
    %v975 = vld [vmem:[#allocation2 + $0x30] sm:$0xff]
    %976 = vmatprep.subr.bf16.mxu0 0
    %977 = vmatpush1.bf16.msra.mxu0 %v396
    %978 = vmatprep.subr.bf16.mxu0 0
    %979 = vmatpush1.bf16.msra.mxu0 %v397
    %980 = vmatprep.subr.bf16.mxu0 0
    %981 = vmatpush1.bf16.msra.mxu0 %v398
    %982 = vmatprep.subr.bf16.mxu0 0
    %983 = vmatpush1.bf16.msra.mxu0 %v399
    %984 = vmatprep.subr.bf16.mxu0 0
    %985 = vmatpush1.bf16.msra.mxu0 %v400
    %986 = vmatprep.subr.bf16.mxu0 0
    %987 = vmatpush1.bf16.msra.mxu0 %v401
    %988 = vmatprep.subr.bf16.mxu0 0
    %989 = vmatpush1.bf16.msra.mxu0 %v402
    %990 = vmatprep.subr.bf16.mxu0 0
    %991 = vmatpush1.bf16.msra.mxu0 %v403
    %992 = vmatprep.subr.bf16.mxu0 0
    %993 = vmatpush1.bf16.msra.mxu0 0
    %994 = vmatprep.subr.bf16.mxu0 0
    %995 = vmatpush1.bf16.msra.mxu0 0
    %996 = vmatprep.subr.bf16.mxu0 0
    %997 = vmatpush1.bf16.msra.mxu0 0
    %998 = vmatprep.subr.bf16.mxu0 0
    %999 = vmatpush1.bf16.msra.mxu0 0
    %1000 = vmatprep.subr.bf16.mxu0 0
    %1001 = vmatpush1.bf16.msra.mxu0 0
    %1002 = vmatprep.subr.bf16.mxu0 0
    %1003 = vmatpush1.bf16.msra.mxu0 0
    %1004 = vmatprep.subr.bf16.mxu0 0
    %1005 = vmatpush1.bf16.msra.mxu0 0
    %1006 = vmatprep.subr.bf16.mxu0 0
    %1007 = vmatpush1.bf16.msra.mxu0 0
    %1008 = vmatprep.mubr.bf16.mxu0 0
    %1009 = vmatmul.mubr.bf16.gmra.mrb[0].mxu0 %v933
    %v1010 = vpop.f32.mrb[0].mxu0
    %v1011 = vadd.f32 0.0, %v1010
    %v1012 = vpop.f32.mrb[0].mxu0
    %v1013 = vpop.f32.mrb[0].mxu0
    %v1014 = vpop.f32.mrb[0].mxu0
    %1015 = vdwg.mxu0
    %v1016 = vadd.f32 %v975, %v1011
    %v1017 = vmax.f32 %v1016, 0.0
    %v1018 = vpack.c.bf16 %v1017, %v1017
    %1019 = vmatprep.subr.bf16.mxu0 0
    %1020 = vmatpush1.bf16.msra.mxu0 %v493
    %1021 = vmatprep.subr.bf16.mxu0 0
    %1022 = vmatpush1.bf16.msra.mxu0 %v494
    %1023 = vmatprep.subr.bf16.mxu0 0
    %1024 = vmatpush1.bf16.msra.mxu0 %v495
    %1025 = vmatprep.subr.bf16.mxu0 0
    %1026 = vmatpush1.bf16.msra.mxu0 %v496
    %1027 = vmatprep.subr.bf16.mxu0 0
    %1028 = vmatpush1.bf16.msra.mxu0 %v497
    %1029 = vmatprep.subr.bf16.mxu0 0
    %1030 = vmatpush1.bf16.msra.mxu0 %v498
    %1031 = vmatprep.subr.bf16.mxu0 0
    %1032 = vmatpush1.bf16.msra.mxu0 %v499
    %1033 = vmatprep.subr.bf16.mxu0 0
    %1034 = vmatpush1.bf16.msra.mxu0 %v500
    %1035 = vmatprep.subr.bf16.mxu0 0
    %1036 = vmatpush1.bf16.msra.mxu0 0
    %1037 = vmatprep.subr.bf16.mxu0 0
    %1038 = vmatpush1.bf16.msra.mxu0 0
    %1039 = vmatprep.subr.bf16.mxu0 0
    %1040 = vmatpush1.bf16.msra.mxu0 0
    %1041 = vmatprep.subr.bf16.mxu0 0
    %1042 = vmatpush1.bf16.msra.mxu0 0
    %1043 = vmatprep.subr.bf16.mxu0 0
    %1044 = vmatpush1.bf16.msra.mxu0 0
    %1045 = vmatprep.subr.bf16.mxu0 0
    %1046 = vmatpush1.bf16.msra.mxu0 0
    %1047 = vmatprep.subr.bf16.mxu0 0
    %1048 = vmatpush1.bf16.msra.mxu0 0
    %1049 = vmatprep.subr.bf16.mxu0 0
    %1050 = vmatpush1.bf16.msra.mxu0 0
    %1051 = vmatprep.mubr.bf16.mxu0 0
    %1052 = vmatmul.mubr.bf16.gmra.mrb[0].mxu0 %v1018
    %v1053 = vpop.f32.mrb[0].mxu0
    %v1054 = vadd.f32 %v459, %v1053
    %v1055 = vpop.f32.mrb[0].mxu0
    %v1056 = vpop.f32.mrb[0].mxu0
    %v1057 = vpop.f32.mrb[0].mxu0
    %1058 = vdwg.mxu0
    %1059 = vst [vmem:[#allocation2 + $0x30] sm:$0xff] %v1054
    %v1060 = vld [vmem:[#allocation2 + $0x38] sm:$0xff]
    %1061 = vmatprep.subr.bf16.mxu0 0
    %1062 = vmatpush1.bf16.msra.mxu0 %v396
    %1063 = vmatprep.subr.bf16.mxu0 0
    %1064 = vmatpush1.bf16.msra.mxu0 %v397
    %1065 = vmatprep.subr.bf16.mxu0 0
    %1066 = vmatpush1.bf16.msra.mxu0 %v398
    %1067 = vmatprep.subr.bf16.mxu0 0
    %1068 = vmatpush1.bf16.msra.mxu0 %v399
    %1069 = vmatprep.subr.bf16.mxu0 0
    %1070 = vmatpush1.bf16.msra.mxu0 %v400
    %1071 = vmatprep.subr.bf16.mxu0 0
    %1072 = vmatpush1.bf16.msra.mxu0 %v401
    %1073 = vmatprep.subr.bf16.mxu0 0
    %1074 = vmatpush1.bf16.msra.mxu0 %v402
    %1075 = vmatprep.subr.bf16.mxu0 0
    %1076 = vmatpush1.bf16.msra.mxu0 %v403
    %1077 = vmatprep.subr.bf16.mxu0 0
    %1078 = vmatpush1.bf16.msra.mxu0 0
    %1079 = vmatprep.subr.bf16.mxu0 0
    %1080 = vmatpush1.bf16.msra.mxu0 0
    %1081 = vmatprep.subr.bf16.mxu0 0
    %1082 = vmatpush1.bf16.msra.mxu0 0
    %1083 = vmatprep.subr.bf16.mxu0 0
    %1084 = vmatpush1.bf16.msra.mxu0 0
    %1085 = vmatprep.subr.bf16.mxu0 0
    %1086 = vmatpush1.bf16.msra.mxu0 0
    %1087 = vmatprep.subr.bf16.mxu0 0
    %1088 = vmatpush1.bf16.msra.mxu0 0
    %1089 = vmatprep.subr.bf16.mxu0 0
    %1090 = vmatpush1.bf16.msra.mxu0 0
    %1091 = vmatprep.subr.bf16.mxu0 0
    %1092 = vmatpush1.bf16.msra.mxu0 0
    %1093 = vmatprep.mubr.bf16.mxu0 0
    %1094 = vmatmul.mubr.bf16.gmra.mrb[0].mxu0 %v1018
    %v1095 = vpop.f32.mrb[0].mxu0
    %v1096 = vadd.f32 0.0, %v1095
    %v1097 = vpop.f32.mrb[0].mxu0
    %v1098 = vpop.f32.mrb[0].mxu0
    %v1099 = vpop.f32.mrb[0].mxu0
    %1100 = vdwg.mxu0
    %v1101 = vadd.f32 %v1060, %v1096
    %v1102 = vmax.f32 %v1101, 0.0
    %v1103 = vpack.c.bf16 %v1102, %v1102
    %1104 = vmatprep.subr.bf16.mxu0 0
    %1105 = vmatpush1.bf16.msra.mxu0 %v493
    %1106 = vmatprep.subr.bf16.mxu0 0
    %1107 = vmatpush1.bf16.msra.mxu0 %v494
    %1108 = vmatprep.subr.bf16.mxu0 0
    %1109 = vmatpush1.bf16.msra.mxu0 %v495
    %1110 = vmatprep.subr.bf16.mxu0 0
    %1111 = vmatpush1.bf16.msra.mxu0 %v496
    %1112 = vmatprep.subr.bf16.mxu0 0
    %1113 = vmatpush1.bf16.msra.mxu0 %v497
    %1114 = vmatprep.subr.bf16.mxu0 0
    %1115 = vmatpush1.bf16.msra.mxu0 %v498
    %1116 = vmatprep.subr.bf16.mxu0 0
    %1117 = vmatpush1.bf16.msra.mxu0 %v499
    %1118 = vmatprep.subr.bf16.mxu0 0
    %1119 = vmatpush1.bf16.msra.mxu0 %v500
    %1120 = vmatprep.subr.bf16.mxu0 0
    %1121 = vmatpush1.bf16.msra.mxu0 0
    %1122 = vmatprep.subr.bf16.mxu0 0
    %1123 = vmatpush1.bf16.msra.mxu0 0
    %1124 = vmatprep.subr.bf16.mxu0 0
    %1125 = vmatpush1.bf16.msra.mxu0 0
    %1126 = vmatprep.subr.bf16.mxu0 0
    %1127 = vmatpush1.bf16.msra.mxu0 0
    %1128 = vmatprep.subr.bf16.mxu0 0
    %1129 = vmatpush1.bf16.msra.mxu0 0
    %1130 = vmatprep.subr.bf16.mxu0 0
    %1131 = vmatpush1.bf16.msra.mxu0 0
    %1132 = vmatprep.subr.bf16.mxu0 0
    %1133 = vmatpush1.bf16.msra.mxu0 0
    %1134 = vmatprep.subr.bf16.mxu0 0
    %1135 = vmatpush1.bf16.msra.mxu0 0
    %1136 = vmatprep.mubr.bf16.mxu0 0
    %1137 = vmatmul.mubr.bf16.gmra.mrb[0].mxu0 %v1103
    %v1138 = vpop.f32.mrb[0].mxu0
    %v1139 = vadd.f32 %v459, %v1138
    %v1140 = vpop.f32.mrb[0].mxu0
    %v1141 = vpop.f32.mrb[0].mxu0
    %v1142 = vpop.f32.mrb[0].mxu0
    %1143 = vdwg.mxu0
    %1144 = vst [vmem:[#allocation2 + $0x38] sm:$0xff] %v1139
    %1145 = vst [vmem:[#allocation16] sm:$0xff] %v1102
    %v1146 = vld [vmem:[#allocation12] sm:$0xf]
    %v1147 = vld [vmem:[#allocation12 + $0x4] sm:$0xf]
    %v1148 = vld [vmem:[#allocation12 + $0x8] sm:$0xf]
    %v1149 = vld [vmem:[#allocation12 + $0xc] sm:$0xf]
    %v1150 = vld [vmem:[#allocation12 + $0x10] sm:$0xf]
    %v1151 = vld [vmem:[#allocation12 + $0x14] sm:$0xf]
    %v1152 = vld [vmem:[#allocation12 + $0x18] sm:$0xf]
    %v1153 = vld [vmem:[#allocation12 + $0x1c] sm:$0xf]
    %v1154 = vld [vmem:[#allocation12 + $0x20] sm:$0xf]
    %v1155 = vld [vmem:[#allocation12 + $0x24] sm:$0xf]
    %v1156 = vld [vmem:[#allocation12 + $0x28] sm:$0xf]
    %v1157 = vld [vmem:[#allocation12 + $0x2c] sm:$0xf]
    %v1158 = vld [vmem:[#allocation12 + $0x30] sm:$0xf]
    %v1159 = vld [vmem:[#allocation12 + $0x34] sm:$0xf]
    %v1160 = vld [vmem:[#allocation12 + $0x38] sm:$0xf]
    %v1161 = vld [vmem:[#allocation12 + $0x3c] sm:$0xf]
    %s1162 = scalar_lea.vmem [#allocation6], 8
    %v1163 = vld [vmem:[%s1162] sm:$0xff]
    %v1164 = vld [vmem:[#allocation2] sm:$0xff]
    %v1165 = vpack.c.bf16 %v1163, %v1163
    %v1182 = vunpack.c.l.b16 %v1146
    %v1183 = vunpack.c.l.b16 %v1147
    %v1184 = vunpack.c.l.b16 %v1148
    %v1185 = vunpack.c.l.b16 %v1149
    %v1186 = vunpack.c.l.b16 %v1150
    %v1187 = vunpack.c.l.b16 %v1151
    %v1188 = vunpack.c.l.b16 %v1152
    %v1189 = vunpack.c.l.b16 %v1153
    %v1190 = vunpack.c.l.b16 %v1154
    %v1191 = vunpack.c.l.b16 %v1155
    %v1192 = vunpack.c.l.b16 %v1156
    %v1193 = vunpack.c.l.b16 %v1157
    %v1194 = vunpack.c.l.b16 %v1158
    %v1195 = vunpack.c.l.b16 %v1159
    %v1196 = vunpack.c.l.b16 %v1160
    %v1197 = vunpack.c.l.b16 %v1161
    %v1198 = vpack.c.b16 %v1183, %v1182
    %v1199 = vpack.c.b16 %v1185, %v1184
    %v1200 = vpack.c.b16 %v1187, %v1186
    %v1201 = vpack.c.b16 %v1189, %v1188
    %v1202 = vpack.c.b16 %v1191, %v1190
    %v1203 = vpack.c.b16 %v1193, %v1192
    %v1204 = vpack.c.b16 %v1195, %v1194
    %v1205 = vpack.c.b16 %v1197, %v1196
    %1214 = vmatprep.subr.bf16.mxu0 0
    %1215 = vmatpush1.bf16.msra.mxu0 %v1198
    %1216 = vmatprep.subr.bf16.mxu0 0
    %1217 = vmatpush1.bf16.msra.mxu0 %v1199
    %1218 = vmatprep.subr.bf16.mxu0 0
    %1219 = vmatpush1.bf16.msra.mxu0 %v1200
    %1220 = vmatprep.subr.bf16.mxu0 0
    %1221 = vmatpush1.bf16.msra.mxu0 %v1201
    %1222 = vmatprep.subr.bf16.mxu0 0
    %1223 = vmatpush1.bf16.msra.mxu0 %v1202
    %1224 = vmatprep.subr.bf16.mxu0 0
    %1225 = vmatpush1.bf16.msra.mxu0 %v1203
    %1226 = vmatprep.subr.bf16.mxu0 0
    %1227 = vmatpush1.bf16.msra.mxu0 %v1204
    %1228 = vmatprep.subr.bf16.mxu0 0
    %1229 = vmatpush1.bf16.msra.mxu0 %v1205
    %1230 = vmatprep.subr.bf16.mxu0 0
    %1231 = vmatpush1.bf16.msra.mxu0 0
    %1232 = vmatprep.subr.bf16.mxu0 0
    %1233 = vmatpush1.bf16.msra.mxu0 0
    %1234 = vmatprep.subr.bf16.mxu0 0
    %1235 = vmatpush1.bf16.msra.mxu0 0
    %1236 = vmatprep.subr.bf16.mxu0 0
    %1237 = vmatpush1.bf16.msra.mxu0 0
    %1238 = vmatprep.subr.bf16.mxu0 0
    %1239 = vmatpush1.bf16.msra.mxu0 0
    %1240 = vmatprep.subr.bf16.mxu0 0
    %1241 = vmatpush1.bf16.msra.mxu0 0
    %1242 = vmatprep.subr.bf16.mxu0 0
    %1243 = vmatpush1.bf16.msra.mxu0 0
    %1244 = vmatprep.subr.bf16.mxu0 0
    %1245 = vmatpush1.bf16.msra.mxu0 0
    %1246 = vmatprep.mubr.bf16.mxu0 0
    %1247 = vmatmul.mubr.bf16.gmra.mrb[0].mxu0 %v1165
    %v1248 = vpop.f32.mrb[0].mxu0
    %v1249 = vadd.f32 0.0, %v1248
    %v1250 = vpop.f32.mrb[0].mxu0
    %v1251 = vpop.f32.mrb[0].mxu0
    %v1252 = vpop.f32.mrb[0].mxu0
    %1253 = vdwg.mxu0
    %v1254 = vadd.f32 %v1164, %v1249
    %v1255 = vmax.f32 %v1254, 0.0
    %v1256 = vpack.c.bf16 %v1255, %v1255
    %v1258 = vlaneseq
    %v1259 = vshrl.u32 %v1258, 7
    %v1260 = vsub.s32 0, %v1259
    %v1261 = vrot.slane %v151, %v1260
    %v1279 = vunpack.c.l.b16 %v135
    %v1280 = vunpack.c.l.b16 %v136
    %v1281 = vunpack.c.l.b16 %v137
    %v1282 = vunpack.c.l.b16 %v138
    %v1283 = vunpack.c.l.b16 %v139
    %v1284 = vunpack.c.l.b16 %v140
    %v1285 = vunpack.c.l.b16 %v141
    %v1286 = vunpack.c.l.b16 %v142
    %v1287 = vunpack.c.l.b16 %v143
    %v1288 = vunpack.c.l.b16 %v144
    %v1289 = vunpack.c.l.b16 %v145
    %v1290 = vunpack.c.l.b16 %v146
    %v1291 = vunpack.c.l.b16 %v147
    %v1292 = vunpack.c.l.b16 %v148
    %v1293 = vunpack.c.l.b16 %v149
    %v1294 = vunpack.c.l.b16 %v150
    %v1295 = vpack.c.b16 %v1280, %v1279
    %v1296 = vpack.c.b16 %v1282, %v1281
    %v1297 = vpack.c.b16 %v1284, %v1283
    %v1298 = vpack.c.b16 %v1286, %v1285
    %v1299 = vpack.c.b16 %v1288, %v1287
    %v1300 = vpack.c.b16 %v1290, %v1289
    %v1301 = vpack.c.b16 %v1292, %v1291
    %v1302 = vpack.c.b16 %v1294, %v1293
    %1311 = vmatprep.subr.bf16.mxu0 0
    %1312 = vmatpush1.bf16.msra.mxu0 %v1295
    %1313 = vmatprep.subr.bf16.mxu0 0
    %1314 = vmatpush1.bf16.msra.mxu0 %v1296
    %1315 = vmatprep.subr.bf16.mxu0 0
    %1316 = vmatpush1.bf16.msra.mxu0 %v1297
    %1317 = vmatprep.subr.bf16.mxu0 0
    %1318 = vmatpush1.bf16.msra.mxu0 %v1298
    %1319 = vmatprep.subr.bf16.mxu0 0
    %1320 = vmatpush1.bf16.msra.mxu0 %v1299
    %1321 = vmatprep.subr.bf16.mxu0 0
    %1322 = vmatpush1.bf16.msra.mxu0 %v1300
    %1323 = vmatprep.subr.bf16.mxu0 0
    %1324 = vmatpush1.bf16.msra.mxu0 %v1301
    %1325 = vmatprep.subr.bf16.mxu0 0
    %1326 = vmatpush1.bf16.msra.mxu0 %v1302
    %1327 = vmatprep.subr.bf16.mxu0 0
    %1328 = vmatpush1.bf16.msra.mxu0 0
    %1329 = vmatprep.subr.bf16.mxu0 0
    %1330 = vmatpush1.bf16.msra.mxu0 0
    %1331 = vmatprep.subr.bf16.mxu0 0
    %1332 = vmatpush1.bf16.msra.mxu0 0
    %1333 = vmatprep.subr.bf16.mxu0 0
    %1334 = vmatpush1.bf16.msra.mxu0 0
    %1335 = vmatprep.subr.bf16.mxu0 0
    %1336 = vmatpush1.bf16.msra.mxu0 0
    %1337 = vmatprep.subr.bf16.mxu0 0
    %1338 = vmatpush1.bf16.msra.mxu0 0
    %1339 = vmatprep.subr.bf16.mxu0 0
    %1340 = vmatpush1.bf16.msra.mxu0 0
    %1341 = vmatprep.subr.bf16.mxu0 0
    %1342 = vmatpush1.bf16.msra.mxu0 0
    %1343 = vmatprep.mubr.bf16.mxu0 0
    %1344 = vmatmul.mubr.bf16.gmra.mrb[0].mxu0 %v1256
    %v1345 = vpop.f32.mrb[0].mxu0
    %v1346 = vadd.f32 %v1261, %v1345
    %v1347 = vpop.f32.mrb[0].mxu0
    %v1348 = vpop.f32.mrb[0].mxu0
    %v1349 = vpop.f32.mrb[0].mxu0
    %1350 = vdwg.mxu0
    %1351 = vst [vmem:[#allocation15] sm:$0xff] %v1346
    %v1352 = vld [vmem:[#allocation2 + $0x8] sm:$0xff]
    %1353 = vmatprep.subr.bf16.mxu0 0
    %1354 = vmatpush1.bf16.msra.mxu0 %v1198
    %1355 = vmatprep.subr.bf16.mxu0 0
    %1356 = vmatpush1.bf16.msra.mxu0 %v1199
    %1357 = vmatprep.subr.bf16.mxu0 0
    %1358 = vmatpush1.bf16.msra.mxu0 %v1200
    %1359 = vmatprep.subr.bf16.mxu0 0
    %1360 = vmatpush1.bf16.msra.mxu0 %v1201
    %1361 = vmatprep.subr.bf16.mxu0 0
    %1362 = vmatpush1.bf16.msra.mxu0 %v1202
    %1363 = vmatprep.subr.bf16.mxu0 0
    %1364 = vmatpush1.bf16.msra.mxu0 %v1203
    %1365 = vmatprep.subr.bf16.mxu0 0
    %1366 = vmatpush1.bf16.msra.mxu0 %v1204
    %1367 = vmatprep.subr.bf16.mxu0 0
    %1368 = vmatpush1.bf16.msra.mxu0 %v1205
    %1369 = vmatprep.subr.bf16.mxu0 0
    %1370 = vmatpush1.bf16.msra.mxu0 0
    %1371 = vmatprep.subr.bf16.mxu0 0
    %1372 = vmatpush1.bf16.msra.mxu0 0
    %1373 = vmatprep.subr.bf16.mxu0 0
    %1374 = vmatpush1.bf16.msra.mxu0 0
    %1375 = vmatprep.subr.bf16.mxu0 0
    %1376 = vmatpush1.bf16.msra.mxu0 0
    %1377 = vmatprep.subr.bf16.mxu0 0
    %1378 = vmatpush1.bf16.msra.mxu0 0
    %1379 = vmatprep.subr.bf16.mxu0 0
    %1380 = vmatpush1.bf16.msra.mxu0 0
    %1381 = vmatprep.subr.bf16.mxu0 0
    %1382 = vmatpush1.bf16.msra.mxu0 0
    %1383 = vmatprep.subr.bf16.mxu0 0
    %1384 = vmatpush1.bf16.msra.mxu0 0
    %1385 = vmatprep.mubr.bf16.mxu0 0
    %1386 = vmatmul.mubr.bf16.gmra.mrb[0].mxu0 %v1256
    %v1387 = vpop.f32.mrb[0].mxu0
    %v1388 = vadd.f32 0.0, %v1387
    %v1389 = vpop.f32.mrb[0].mxu0
    %v1390 = vpop.f32.mrb[0].mxu0
    %v1391 = vpop.f32.mrb[0].mxu0
    %1392 = vdwg.mxu0
    %v1393 = vadd.f32 %v1352, %v1388
    %v1394 = vmax.f32 %v1393, 0.0
    %v1395 = vpack.c.bf16 %v1394, %v1394
    %1396 = vmatprep.subr.bf16.mxu0 0
    %1397 = vmatpush1.bf16.msra.mxu0 %v1295
    %1398 = vmatprep.subr.bf16.mxu0 0
    %1399 = vmatpush1.bf16.msra.mxu0 %v1296
    %1400 = vmatprep.subr.bf16.mxu0 0
    %1401 = vmatpush1.bf16.msra.mxu0 %v1297
    %1402 = vmatprep.subr.bf16.mxu0 0
    %1403 = vmatpush1.bf16.msra.mxu0 %v1298
    %1404 = vmatprep.subr.bf16.mxu0 0
    %1405 = vmatpush1.bf16.msra.mxu0 %v1299
    %1406 = vmatprep.subr.bf16.mxu0 0
    %1407 = vmatpush1.bf16.msra.mxu0 %v1300
    %1408 = vmatprep.subr.bf16.mxu0 0
    %1409 = vmatpush1.bf16.msra.mxu0 %v1301
    %1410 = vmatprep.subr.bf16.mxu0 0
    %1411 = vmatpush1.bf16.msra.mxu0 %v1302
    %1412 = vmatprep.subr.bf16.mxu0 0
    %1413 = vmatpush1.bf16.msra.mxu0 0
    %1414 = vmatprep.subr.bf16.mxu0 0
    %1415 = vmatpush1.bf16.msra.mxu0 0
    %1416 = vmatprep.subr.bf16.mxu0 0
    %1417 = vmatpush1.bf16.msra.mxu0 0
    %1418 = vmatprep.subr.bf16.mxu0 0
    %1419 = vmatpush1.bf16.msra.mxu0 0
    %1420 = vmatprep.subr.bf16.mxu0 0
    %1421 = vmatpush1.bf16.msra.mxu0 0
    %1422 = vmatprep.subr.bf16.mxu0 0
    %1423 = vmatpush1.bf16.msra.mxu0 0
    %1424 = vmatprep.subr.bf16.mxu0 0
    %1425 = vmatpush1.bf16.msra.mxu0 0
    %1426 = vmatprep.subr.bf16.mxu0 0
    %1427 = vmatpush1.bf16.msra.mxu0 0
    %1428 = vmatprep.mubr.bf16.mxu0 0
    %1429 = vmatmul.mubr.bf16.gmra.mrb[0].mxu0 %v1395
    %v1430 = vpop.f32.mrb[0].mxu0
    %v1431 = vadd.f32 %v1261, %v1430
    %v1432 = vpop.f32.mrb[0].mxu0
    %v1433 = vpop.f32.mrb[0].mxu0
    %v1434 = vpop.f32.mrb[0].mxu0
    %1435 = vdwg.mxu0
    %1436 = vst [vmem:[#allocation15 + $0x8] sm:$0xff] %v1431
    %v1437 = vld [vmem:[#allocation2 + $0x10] sm:$0xff]
    %1438 = vmatprep.subr.bf16.mxu0 0
    %1439 = vmatpush1.bf16.msra.mxu0 %v1198
    %1440 = vmatprep.subr.bf16.mxu0 0
    %1441 = vmatpush1.bf16.msra.mxu0 %v1199
    %1442 = vmatprep.subr.bf16.mxu0 0
    %1443 = vmatpush1.bf16.msra.mxu0 %v1200
    %1444 = vmatprep.subr.bf16.mxu0 0
    %1445 = vmatpush1.bf16.msra.mxu0 %v1201
    %1446 = vmatprep.subr.bf16.mxu0 0
    %1447 = vmatpush1.bf16.msra.mxu0 %v1202
    %1448 = vmatprep.subr.bf16.mxu0 0
    %1449 = vmatpush1.bf16.msra.mxu0 %v1203
    %1450 = vmatprep.subr.bf16.mxu0 0
    %1451 = vmatpush1.bf16.msra.mxu0 %v1204
    %1452 = vmatprep.subr.bf16.mxu0 0
    %1453 = vmatpush1.bf16.msra.mxu0 %v1205
    %1454 = vmatprep.subr.bf16.mxu0 0
    %1455 = vmatpush1.bf16.msra.mxu0 0
    %1456 = vmatprep.subr.bf16.mxu0 0
    %1457 = vmatpush1.bf16.msra.mxu0 0
    %1458 = vmatprep.subr.bf16.mxu0 0
    %1459 = vmatpush1.bf16.msra.mxu0 0
    %1460 = vmatprep.subr.bf16.mxu0 0
    %1461 = vmatpush1.bf16.msra.mxu0 0
    %1462 = vmatprep.subr.bf16.mxu0 0
    %1463 = vmatpush1.bf16.msra.mxu0 0
    %1464 = vmatprep.subr.bf16.mxu0 0
    %1465 = vmatpush1.bf16.msra.mxu0 0
    %1466 = vmatprep.subr.bf16.mxu0 0
    %1467 = vmatpush1.bf16.msra.mxu0 0
    %1468 = vmatprep.subr.bf16.mxu0 0
    %1469 = vmatpush1.bf16.msra.mxu0 0
    %1470 = vmatprep.mubr.bf16.mxu0 0
    %1471 = vmatmul.mubr.bf16.gmra.mrb[0].mxu0 %v1395
    %v1472 = vpop.f32.mrb[0].mxu0
    %v1473 = vadd.f32 0.0, %v1472
    %v1474 = vpop.f32.mrb[0].mxu0
    %v1475 = vpop.f32.mrb[0].mxu0
    %v1476 = vpop.f32.mrb[0].mxu0
    %1477 = vdwg.mxu0
    %v1478 = vadd.f32 %v1437, %v1473
    %v1479 = vmax.f32 %v1478, 0.0
    %v1480 = vpack.c.bf16 %v1479, %v1479
    %1481 = vmatprep.subr.bf16.mxu0 0
    %1482 = vmatpush1.bf16.msra.mxu0 %v1295
    %1483 = vmatprep.subr.bf16.mxu0 0
    %1484 = vmatpush1.bf16.msra.mxu0 %v1296
    %1485 = vmatprep.subr.bf16.mxu0 0
    %1486 = vmatpush1.bf16.msra.mxu0 %v1297
    %1487 = vmatprep.subr.bf16.mxu0 0
    %1488 = vmatpush1.bf16.msra.mxu0 %v1298
    %1489 = vmatprep.subr.bf16.mxu0 0
    %1490 = vmatpush1.bf16.msra.mxu0 %v1299
    %1491 = vmatprep.subr.bf16.mxu0 0
    %1492 = vmatpush1.bf16.msra.mxu0 %v1300
    %1493 = vmatprep.subr.bf16.mxu0 0
    %1494 = vmatpush1.bf16.msra.mxu0 %v1301
    %1495 = vmatprep.subr.bf16.mxu0 0
    %1496 = vmatpush1.bf16.msra.mxu0 %v1302
    %1497 = vmatprep.subr.bf16.mxu0 0
    %1498 = vmatpush1.bf16.msra.mxu0 0
    %1499 = vmatprep.subr.bf16.mxu0 0
    %1500 = vmatpush1.bf16.msra.mxu0 0
    %1501 = vmatprep.subr.bf16.mxu0 0
    %1502 = vmatpush1.bf16.msra.mxu0 0
    %1503 = vmatprep.subr.bf16.mxu0 0
    %1504 = vmatpush1.bf16.msra.mxu0 0
    %1505 = vmatprep.subr.bf16.mxu0 0
    %1506 = vmatpush1.bf16.msra.mxu0 0
    %1507 = vmatprep.subr.bf16.mxu0 0
    %1508 = vmatpush1.bf16.msra.mxu0 0
    %1509 = vmatprep.subr.bf16.mxu0 0
    %1510 = vmatpush1.bf16.msra.mxu0 0
    %1511 = vmatprep.subr.bf16.mxu0 0
    %1512 = vmatpush1.bf16.msra.mxu0 0
    %1513 = vmatprep.mubr.bf16.mxu0 0
    %1514 = vmatmul.mubr.bf16.gmra.mrb[0].mxu0 %v1480
    %v1515 = vpop.f32.mrb[0].mxu0
    %v1516 = vadd.f32 %v1261, %v1515
    %v1517 = vpop.f32.mrb[0].mxu0
    %v1518 = vpop.f32.mrb[0].mxu0
    %v1519 = vpop.f32.mrb[0].mxu0
    %1520 = vdwg.mxu0
    %1521 = vst [vmem:[#allocation15 + $0x10] sm:$0xff] %v1516
    %v1522 = vld [vmem:[#allocation2 + $0x18] sm:$0xff]
    %1523 = vmatprep.subr.bf16.mxu0 0
    %1524 = vmatpush1.bf16.msra.mxu0 %v1198
    %1525 = vmatprep.subr.bf16.mxu0 0
    %1526 = vmatpush1.bf16.msra.mxu0 %v1199
    %1527 = vmatprep.subr.bf16.mxu0 0
    %1528 = vmatpush1.bf16.msra.mxu0 %v1200
    %1529 = vmatprep.subr.bf16.mxu0 0
    %1530 = vmatpush1.bf16.msra.mxu0 %v1201
    %1531 = vmatprep.subr.bf16.mxu0 0
    %1532 = vmatpush1.bf16.msra.mxu0 %v1202
    %1533 = vmatprep.subr.bf16.mxu0 0
    %1534 = vmatpush1.bf16.msra.mxu0 %v1203
    %1535 = vmatprep.subr.bf16.mxu0 0
    %1536 = vmatpush1.bf16.msra.mxu0 %v1204
    %1537 = vmatprep.subr.bf16.mxu0 0
    %1538 = vmatpush1.bf16.msra.mxu0 %v1205
    %1539 = vmatprep.subr.bf16.mxu0 0
    %1540 = vmatpush1.bf16.msra.mxu0 0
    %1541 = vmatprep.subr.bf16.mxu0 0
    %1542 = vmatpush1.bf16.msra.mxu0 0
    %1543 = vmatprep.subr.bf16.mxu0 0
    %1544 = vmatpush1.bf16.msra.mxu0 0
    %1545 = vmatprep.subr.bf16.mxu0 0
    %1546 = vmatpush1.bf16.msra.mxu0 0
    %1547 = vmatprep.subr.bf16.mxu0 0
    %1548 = vmatpush1.bf16.msra.mxu0 0
    %1549 = vmatprep.subr.bf16.mxu0 0
    %1550 = vmatpush1.bf16.msra.mxu0 0
    %1551 = vmatprep.subr.bf16.mxu0 0
    %1552 = vmatpush1.bf16.msra.mxu0 0
    %1553 = vmatprep.subr.bf16.mxu0 0
    %1554 = vmatpush1.bf16.msra.mxu0 0
    %1555 = vmatprep.mubr.bf16.mxu0 0
    %1556 = vmatmul.mubr.bf16.gmra.mrb[0].mxu0 %v1480
    %v1557 = vpop.f32.mrb[0].mxu0
    %v1558 = vadd.f32 0.0, %v1557
    %v1559 = vpop.f32.mrb[0].mxu0
    %v1560 = vpop.f32.mrb[0].mxu0
    %v1561 = vpop.f32.mrb[0].mxu0
    %1562 = vdwg.mxu0
    %v1563 = vadd.f32 %v1522, %v1558
    %v1564 = vmax.f32 %v1563, 0.0
    %v1565 = vpack.c.bf16 %v1564, %v1564
    %1566 = vmatprep.subr.bf16.mxu0 0
    %1567 = vmatpush1.bf16.msra.mxu0 %v1295
    %1568 = vmatprep.subr.bf16.mxu0 0
    %1569 = vmatpush1.bf16.msra.mxu0 %v1296
    %1570 = vmatprep.subr.bf16.mxu0 0
    %1571 = vmatpush1.bf16.msra.mxu0 %v1297
    %1572 = vmatprep.subr.bf16.mxu0 0
    %1573 = vmatpush1.bf16.msra.mxu0 %v1298
    %1574 = vmatprep.subr.bf16.mxu0 0
    %1575 = vmatpush1.bf16.msra.mxu0 %v1299
    %1576 = vmatprep.subr.bf16.mxu0 0
    %1577 = vmatpush1.bf16.msra.mxu0 %v1300
    %1578 = vmatprep.subr.bf16.mxu0 0
    %1579 = vmatpush1.bf16.msra.mxu0 %v1301
    %1580 = vmatprep.subr.bf16.mxu0 0
    %1581 = vmatpush1.bf16.msra.mxu0 %v1302
    %1582 = vmatprep.subr.bf16.mxu0 0
    %1583 = vmatpush1.bf16.msra.mxu0 0
    %1584 = vmatprep.subr.bf16.mxu0 0
    %1585 = vmatpush1.bf16.msra.mxu0 0
    %1586 = vmatprep.subr.bf16.mxu0 0
    %1587 = vmatpush1.bf16.msra.mxu0 0
    %1588 = vmatprep.subr.bf16.mxu0 0
    %1589 = vmatpush1.bf16.msra.mxu0 0
    %1590 = vmatprep.subr.bf16.mxu0 0
    %1591 = vmatpush1.bf16.msra.mxu0 0
    %1592 = vmatprep.subr.bf16.mxu0 0
    %1593 = vmatpush1.bf16.msra.mxu0 0
    %1594 = vmatprep.subr.bf16.mxu0 0
    %1595 = vmatpush1.bf16.msra.mxu0 0
    %1596 = vmatprep.subr.bf16.mxu0 0
    %1597 = vmatpush1.bf16.msra.mxu0 0
    %1598 = vmatprep.mubr.bf16.mxu0 0
    %1599 = vmatmul.mubr.bf16.gmra.mrb[0].mxu0 %v1565
    %v1600 = vpop.f32.mrb[0].mxu0
    %v1601 = vadd.f32 %v1261, %v1600
    %v1602 = vpop.f32.mrb[0].mxu0
    %v1603 = vpop.f32.mrb[0].mxu0
    %v1604 = vpop.f32.mrb[0].mxu0
    %1605 = vdwg.mxu0
    %1606 = vst [vmem:[#allocation15 + $0x18] sm:$0xff] %v1601
    %v1607 = vld [vmem:[#allocation2 + $0x20] sm:$0xff]
    %1608 = vmatprep.subr.bf16.mxu0 0
    %1609 = vmatpush1.bf16.msra.mxu0 %v1198
    %1610 = vmatprep.subr.bf16.mxu0 0
    %1611 = vmatpush1.bf16.msra.mxu0 %v1199
    %1612 = vmatprep.subr.bf16.mxu0 0
    %1613 = vmatpush1.bf16.msra.mxu0 %v1200
    %1614 = vmatprep.subr.bf16.mxu0 0
    %1615 = vmatpush1.bf16.msra.mxu0 %v1201
    %1616 = vmatprep.subr.bf16.mxu0 0
    %1617 = vmatpush1.bf16.msra.mxu0 %v1202
    %1618 = vmatprep.subr.bf16.mxu0 0
    %1619 = vmatpush1.bf16.msra.mxu0 %v1203
    %1620 = vmatprep.subr.bf16.mxu0 0
    %1621 = vmatpush1.bf16.msra.mxu0 %v1204
    %1622 = vmatprep.subr.bf16.mxu0 0
    %1623 = vmatpush1.bf16.msra.mxu0 %v1205
    %1624 = vmatprep.subr.bf16.mxu0 0
    %1625 = vmatpush1.bf16.msra.mxu0 0
    %1626 = vmatprep.subr.bf16.mxu0 0
    %1627 = vmatpush1.bf16.msra.mxu0 0
    %1628 = vmatprep.subr.bf16.mxu0 0
    %1629 = vmatpush1.bf16.msra.mxu0 0
    %1630 = vmatprep.subr.bf16.mxu0 0
    %1631 = vmatpush1.bf16.msra.mxu0 0
    %1632 = vmatprep.subr.bf16.mxu0 0
    %1633 = vmatpush1.bf16.msra.mxu0 0
    %1634 = vmatprep.subr.bf16.mxu0 0
    %1635 = vmatpush1.bf16.msra.mxu0 0
    %1636 = vmatprep.subr.bf16.mxu0 0
    %1637 = vmatpush1.bf16.msra.mxu0 0
    %1638 = vmatprep.subr.bf16.mxu0 0
    %1639 = vmatpush1.bf16.msra.mxu0 0
    %1640 = vmatprep.mubr.bf16.mxu0 0
    %1641 = vmatmul.mubr.bf16.gmra.mrb[0].mxu0 %v1565
    %v1642 = vpop.f32.mrb[0].mxu0
    %v1643 = vadd.f32 0.0, %v1642
    %v1644 = vpop.f32.mrb[0].mxu0
    %v1645 = vpop.f32.mrb[0].mxu0
    %v1646 = vpop.f32.mrb[0].mxu0
    %1647 = vdwg.mxu0
    %v1648 = vadd.f32 %v1607, %v1643
    %v1649 = vmax.f32 %v1648, 0.0
    %v1650 = vpack.c.bf16 %v1649, %v1649
    %1651 = vmatprep.subr.bf16.mxu0 0
    %1652 = vmatpush1.bf16.msra.mxu0 %v1295
    %1653 = vmatprep.subr.bf16.mxu0 0
    %1654 = vmatpush1.bf16.msra.mxu0 %v1296
    %1655 = vmatprep.subr.bf16.mxu0 0
    %1656 = vmatpush1.bf16.msra.mxu0 %v1297
    %1657 = vmatprep.subr.bf16.mxu0 0
    %1658 = vmatpush1.bf16.msra.mxu0 %v1298
    %1659 = vmatprep.subr.bf16.mxu0 0
    %1660 = vmatpush1.bf16.msra.mxu0 %v1299
    %1661 = vmatprep.subr.bf16.mxu0 0
    %1662 = vmatpush1.bf16.msra.mxu0 %v1300
    %1663 = vmatprep.subr.bf16.mxu0 0
    %1664 = vmatpush1.bf16.msra.mxu0 %v1301
    %1665 = vmatprep.subr.bf16.mxu0 0
    %1666 = vmatpush1.bf16.msra.mxu0 %v1302
    %1667 = vmatprep.subr.bf16.mxu0 0
    %1668 = vmatpush1.bf16.msra.mxu0 0
    %1669 = vmatprep.subr.bf16.mxu0 0
    %1670 = vmatpush1.bf16.msra.mxu0 0
    %1671 = vmatprep.subr.bf16.mxu0 0
    %1672 = vmatpush1.bf16.msra.mxu0 0
    %1673 = vmatprep.subr.bf16.mxu0 0
    %1674 = vmatpush1.bf16.msra.mxu0 0
    %1675 = vmatprep.subr.bf16.mxu0 0
    %1676 = vmatpush1.bf16.msra.mxu0 0
    %1677 = vmatprep.subr.bf16.mxu0 0
    %1678 = vmatpush1.bf16.msra.mxu0 0
    %1679 = vmatprep.subr.bf16.mxu0 0
    %1680 = vmatpush1.bf16.msra.mxu0 0
    %1681 = vmatprep.subr.bf16.mxu0 0
    %1682 = vmatpush1.bf16.msra.mxu0 0
    %1683 = vmatprep.mubr.bf16.mxu0 0
    %1684 = vmatmul.mubr.bf16.gmra.mrb[0].mxu0 %v1650
    %v1685 = vpop.f32.mrb[0].mxu0
    %v1686 = vadd.f32 %v1261, %v1685
    %v1687 = vpop.f32.mrb[0].mxu0
    %v1688 = vpop.f32.mrb[0].mxu0
    %v1689 = vpop.f32.mrb[0].mxu0
    %1690 = vdwg.mxu0
    %1691 = vst [vmem:[#allocation15 + $0x20] sm:$0xff] %v1686
    %v1692 = vld [vmem:[#allocation2 + $0x28] sm:$0xff]
    %1693 = vmatprep.subr.bf16.mxu0 0
    %1694 = vmatpush1.bf16.msra.mxu0 %v1198
    %1695 = vmatprep.subr.bf16.mxu0 0
    %1696 = vmatpush1.bf16.msra.mxu0 %v1199
    %1697 = vmatprep.subr.bf16.mxu0 0
    %1698 = vmatpush1.bf16.msra.mxu0 %v1200
    %1699 = vmatprep.subr.bf16.mxu0 0
    %1700 = vmatpush1.bf16.msra.mxu0 %v1201
    %1701 = vmatprep.subr.bf16.mxu0 0
    %1702 = vmatpush1.bf16.msra.mxu0 %v1202
    %1703 = vmatprep.subr.bf16.mxu0 0
    %1704 = vmatpush1.bf16.msra.mxu0 %v1203
    %1705 = vmatprep.subr.bf16.mxu0 0
    %1706 = vmatpush1.bf16.msra.mxu0 %v1204
    %1707 = vmatprep.subr.bf16.mxu0 0
    %1708 = vmatpush1.bf16.msra.mxu0 %v1205
    %1709 = vmatprep.subr.bf16.mxu0 0
    %1710 = vmatpush1.bf16.msra.mxu0 0
    %1711 = vmatprep.subr.bf16.mxu0 0
    %1712 = vmatpush1.bf16.msra.mxu0 0
    %1713 = vmatprep.subr.bf16.mxu0 0
    %1714 = vmatpush1.bf16.msra.mxu0 0
    %1715 = vmatprep.subr.bf16.mxu0 0
    %1716 = vmatpush1.bf16.msra.mxu0 0
    %1717 = vmatprep.subr.bf16.mxu0 0
    %1718 = vmatpush1.bf16.msra.mxu0 0
    %1719 = vmatprep.subr.bf16.mxu0 0
    %1720 = vmatpush1.bf16.msra.mxu0 0
    %1721 = vmatprep.subr.bf16.mxu0 0
    %1722 = vmatpush1.bf16.msra.mxu0 0
    %1723 = vmatprep.subr.bf16.mxu0 0
    %1724 = vmatpush1.bf16.msra.mxu0 0
    %1725 = vmatprep.mubr.bf16.mxu0 0
    %1726 = vmatmul.mubr.bf16.gmra.mrb[0].mxu0 %v1650
    %v1727 = vpop.f32.mrb[0].mxu0
    %v1728 = vadd.f32 0.0, %v1727
    %v1729 = vpop.f32.mrb[0].mxu0
    %v1730 = vpop.f32.mrb[0].mxu0
    %v1731 = vpop.f32.mrb[0].mxu0
    %1732 = vdwg.mxu0
    %v1733 = vadd.f32 %v1692, %v1728
    %v1734 = vmax.f32 %v1733, 0.0
    %v1735 = vpack.c.bf16 %v1734, %v1734
    %1736 = vmatprep.subr.bf16.mxu0 0
    %1737 = vmatpush1.bf16.msra.mxu0 %v1295
    %1738 = vmatprep.subr.bf16.mxu0 0
    %1739 = vmatpush1.bf16.msra.mxu0 %v1296
    %1740 = vmatprep.subr.bf16.mxu0 0
    %1741 = vmatpush1.bf16.msra.mxu0 %v1297
    %1742 = vmatprep.subr.bf16.mxu0 0
    %1743 = vmatpush1.bf16.msra.mxu0 %v1298
    %1744 = vmatprep.subr.bf16.mxu0 0
    %1745 = vmatpush1.bf16.msra.mxu0 %v1299
    %1746 = vmatprep.subr.bf16.mxu0 0
    %1747 = vmatpush1.bf16.msra.mxu0 %v1300
    %1748 = vmatprep.subr.bf16.mxu0 0
    %1749 = vmatpush1.bf16.msra.mxu0 %v1301
    %1750 = vmatprep.subr.bf16.mxu0 0
    %1751 = vmatpush1.bf16.msra.mxu0 %v1302
    %1752 = vmatprep.subr.bf16.mxu0 0
    %1753 = vmatpush1.bf16.msra.mxu0 0
    %1754 = vmatprep.subr.bf16.mxu0 0
    %1755 = vmatpush1.bf16.msra.mxu0 0
    %1756 = vmatprep.subr.bf16.mxu0 0
    %1757 = vmatpush1.bf16.msra.mxu0 0
    %1758 = vmatprep.subr.bf16.mxu0 0
    %1759 = vmatpush1.bf16.msra.mxu0 0
    %1760 = vmatprep.subr.bf16.mxu0 0
    %1761 = vmatpush1.bf16.msra.mxu0 0
    %1762 = vmatprep.subr.bf16.mxu0 0
    %1763 = vmatpush1.bf16.msra.mxu0 0
    %1764 = vmatprep.subr.bf16.mxu0 0
    %1765 = vmatpush1.bf16.msra.mxu0 0
    %1766 = vmatprep.subr.bf16.mxu0 0
    %1767 = vmatpush1.bf16.msra.mxu0 0
    %1768 = vmatprep.mubr.bf16.mxu0 0
    %1769 = vmatmul.mubr.bf16.gmra.mrb[0].mxu0 %v1735
    %v1770 = vpop.f32.mrb[0].mxu0
    %v1771 = vadd.f32 %v1261, %v1770
    %v1772 = vpop.f32.mrb[0].mxu0
    %v1773 = vpop.f32.mrb[0].mxu0
    %v1774 = vpop.f32.mrb[0].mxu0
    %1775 = vdwg.mxu0
    %1776 = vst [vmem:[#allocation15 + $0x28] sm:$0xff] %v1771
    %v1777 = vld [vmem:[#allocation2 + $0x30] sm:$0xff]
    %1778 = vmatprep.subr.bf16.mxu0 0
    %1779 = vmatpush1.bf16.msra.mxu0 %v1198
    %1780 = vmatprep.subr.bf16.mxu0 0
    %1781 = vmatpush1.bf16.msra.mxu0 %v1199
    %1782 = vmatprep.subr.bf16.mxu0 0
    %1783 = vmatpush1.bf16.msra.mxu0 %v1200
    %1784 = vmatprep.subr.bf16.mxu0 0
    %1785 = vmatpush1.bf16.msra.mxu0 %v1201
    %1786 = vmatprep.subr.bf16.mxu0 0
    %1787 = vmatpush1.bf16.msra.mxu0 %v1202
    %1788 = vmatprep.subr.bf16.mxu0 0
    %1789 = vmatpush1.bf16.msra.mxu0 %v1203
    %1790 = vmatprep.subr.bf16.mxu0 0
    %1791 = vmatpush1.bf16.msra.mxu0 %v1204
    %1792 = vmatprep.subr.bf16.mxu0 0
    %1793 = vmatpush1.bf16.msra.mxu0 %v1205
    %1794 = vmatprep.subr.bf16.mxu0 0
    %1795 = vmatpush1.bf16.msra.mxu0 0
    %1796 = vmatprep.subr.bf16.mxu0 0
    %1797 = vmatpush1.bf16.msra.mxu0 0
    %1798 = vmatprep.subr.bf16.mxu0 0
    %1799 = vmatpush1.bf16.msra.mxu0 0
    %1800 = vmatprep.subr.bf16.mxu0 0
    %1801 = vmatpush1.bf16.msra.mxu0 0
    %1802 = vmatprep.subr.bf16.mxu0 0
    %1803 = vmatpush1.bf16.msra.mxu0 0
    %1804 = vmatprep.subr.bf16.mxu0 0
    %1805 = vmatpush1.bf16.msra.mxu0 0
    %1806 = vmatprep.subr.bf16.mxu0 0
    %1807 = vmatpush1.bf16.msra.mxu0 0
    %1808 = vmatprep.subr.bf16.mxu0 0
    %1809 = vmatpush1.bf16.msra.mxu0 0
    %1810 = vmatprep.mubr.bf16.mxu0 0
    %1811 = vmatmul.mubr.bf16.gmra.mrb[0].mxu0 %v1735
    %v1812 = vpop.f32.mrb[0].mxu0
    %v1813 = vadd.f32 0.0, %v1812
    %v1814 = vpop.f32.mrb[0].mxu0
    %v1815 = vpop.f32.mrb[0].mxu0
    %v1816 = vpop.f32.mrb[0].mxu0
    %1817 = vdwg.mxu0
    %v1818 = vadd.f32 %v1777, %v1813
    %v1819 = vmax.f32 %v1818, 0.0
    %v1820 = vpack.c.bf16 %v1819, %v1819
    %1821 = vmatprep.subr.bf16.mxu0 0
    %1822 = vmatpush1.bf16.msra.mxu0 %v1295
    %1823 = vmatprep.subr.bf16.mxu0 0
    %1824 = vmatpush1.bf16.msra.mxu0 %v1296
    %1825 = vmatprep.subr.bf16.mxu0 0
    %1826 = vmatpush1.bf16.msra.mxu0 %v1297
    %1827 = vmatprep.subr.bf16.mxu0 0
    %1828 = vmatpush1.bf16.msra.mxu0 %v1298
    %1829 = vmatprep.subr.bf16.mxu0 0
    %1830 = vmatpush1.bf16.msra.mxu0 %v1299
    %1831 = vmatprep.subr.bf16.mxu0 0
    %1832 = vmatpush1.bf16.msra.mxu0 %v1300
    %1833 = vmatprep.subr.bf16.mxu0 0
    %1834 = vmatpush1.bf16.msra.mxu0 %v1301
    %1835 = vmatprep.subr.bf16.mxu0 0
    %1836 = vmatpush1.bf16.msra.mxu0 %v1302
    %1837 = vmatprep.subr.bf16.mxu0 0
    %1838 = vmatpush1.bf16.msra.mxu0 0
    %1839 = vmatprep.subr.bf16.mxu0 0
    %1840 = vmatpush1.bf16.msra.mxu0 0
    %1841 = vmatprep.subr.bf16.mxu0 0
    %1842 = vmatpush1.bf16.msra.mxu0 0
    %1843 = vmatprep.subr.bf16.mxu0 0
    %1844 = vmatpush1.bf16.msra.mxu0 0
    %1845 = vmatprep.subr.bf16.mxu0 0
    %1846 = vmatpush1.bf16.msra.mxu0 0
    %1847 = vmatprep.subr.bf16.mxu0 0
    %1848 = vmatpush1.bf16.msra.mxu0 0
    %1849 = vmatprep.subr.bf16.mxu0 0
    %1850 = vmatpush1.bf16.msra.mxu0 0
    %1851 = vmatprep.subr.bf16.mxu0 0
    %1852 = vmatpush1.bf16.msra.mxu0 0
    %1853 = vmatprep.mubr.bf16.mxu0 0
    %1854 = vmatmul.mubr.bf16.gmra.mrb[0].mxu0 %v1820
    %v1855 = vpop.f32.mrb[0].mxu0
    %v1856 = vadd.f32 %v1261, %v1855
    %v1857 = vpop.f32.mrb[0].mxu0
    %v1858 = vpop.f32.mrb[0].mxu0
    %v1859 = vpop.f32.mrb[0].mxu0
    %1860 = vdwg.mxu0
    %1861 = vst [vmem:[#allocation15 + $0x30] sm:$0xff] %v1856
    %v1862 = vld [vmem:[#allocation2 + $0x38] sm:$0xff]
    %1863 = vmatprep.subr.bf16.mxu0 0
    %1864 = vmatpush1.bf16.msra.mxu0 %v1198
    %1865 = vmatprep.subr.bf16.mxu0 0
    %1866 = vmatpush1.bf16.msra.mxu0 %v1199
    %1867 = vmatprep.subr.bf16.mxu0 0
    %1868 = vmatpush1.bf16.msra.mxu0 %v1200
    %1869 = vmatprep.subr.bf16.mxu0 0
    %1870 = vmatpush1.bf16.msra.mxu0 %v1201
    %1871 = vmatprep.subr.bf16.mxu0 0
    %1872 = vmatpush1.bf16.msra.mxu0 %v1202
    %1873 = vmatprep.subr.bf16.mxu0 0
    %1874 = vmatpush1.bf16.msra.mxu0 %v1203
    %1875 = vmatprep.subr.bf16.mxu0 0
    %1876 = vmatpush1.bf16.msra.mxu0 %v1204
    %1877 = vmatprep.subr.bf16.mxu0 0
    %1878 = vmatpush1.bf16.msra.mxu0 %v1205
    %1879 = vmatprep.subr.bf16.mxu0 0
    %1880 = vmatpush1.bf16.msra.mxu0 0
    %1881 = vmatprep.subr.bf16.mxu0 0
    %1882 = vmatpush1.bf16.msra.mxu0 0
    %1883 = vmatprep.subr.bf16.mxu0 0
    %1884 = vmatpush1.bf16.msra.mxu0 0
    %1885 = vmatprep.subr.bf16.mxu0 0
    %1886 = vmatpush1.bf16.msra.mxu0 0
    %1887 = vmatprep.subr.bf16.mxu0 0
    %1888 = vmatpush1.bf16.msra.mxu0 0
    %1889 = vmatprep.subr.bf16.mxu0 0
    %1890 = vmatpush1.bf16.msra.mxu0 0
    %1891 = vmatprep.subr.bf16.mxu0 0
    %1892 = vmatpush1.bf16.msra.mxu0 0
    %1893 = vmatprep.subr.bf16.mxu0 0
    %1894 = vmatpush1.bf16.msra.mxu0 0
    %1895 = vmatprep.mubr.bf16.mxu0 0
    %1896 = vmatmul.mubr.bf16.gmra.mrb[0].mxu0 %v1820
    %v1897 = vpop.f32.mrb[0].mxu0
    %v1898 = vadd.f32 0.0, %v1897
    %v1899 = vpop.f32.mrb[0].mxu0
    %v1900 = vpop.f32.mrb[0].mxu0
    %v1901 = vpop.f32.mrb[0].mxu0
    %1902 = vdwg.mxu0
    %v1903 = vadd.f32 %v1862, %v1898
    %v1904 = vmax.f32 %v1903, 0.0
    %v1905 = vpack.c.bf16 %v1904, %v1904
    %1906 = vmatprep.subr.bf16.mxu0 0
    %1907 = vmatpush1.bf16.msra.mxu0 %v1295
    %1908 = vmatprep.subr.bf16.mxu0 0
    %1909 = vmatpush1.bf16.msra.mxu0 %v1296
    %1910 = vmatprep.subr.bf16.mxu0 0
    %1911 = vmatpush1.bf16.msra.mxu0 %v1297
    %1912 = vmatprep.subr.bf16.mxu0 0
    %1913 = vmatpush1.bf16.msra.mxu0 %v1298
    %1914 = vmatprep.subr.bf16.mxu0 0
    %1915 = vmatpush1.bf16.msra.mxu0 %v1299
    %1916 = vmatprep.subr.bf16.mxu0 0
    %1917 = vmatpush1.bf16.msra.mxu0 %v1300
    %1918 = vmatprep.subr.bf16.mxu0 0
    %1919 = vmatpush1.bf16.msra.mxu0 %v1301
    %1920 = vmatprep.subr.bf16.mxu0 0
    %1921 = vmatpush1.bf16.msra.mxu0 %v1302
    %1922 = vmatprep.subr.bf16.mxu0 0
    %1923 = vmatpush1.bf16.msra.mxu0 0
    %1924 = vmatprep.subr.bf16.mxu0 0
    %1925 = vmatpush1.bf16.msra.mxu0 0
    %1926 = vmatprep.subr.bf16.mxu0 0
    %1927 = vmatpush1.bf16.msra.mxu0 0
    %1928 = vmatprep.subr.bf16.mxu0 0
    %1929 = vmatpush1.bf16.msra.mxu0 0
    %1930 = vmatprep.subr.bf16.mxu0 0
    %1931 = vmatpush1.bf16.msra.mxu0 0
    %1932 = vmatprep.subr.bf16.mxu0 0
    %1933 = vmatpush1.bf16.msra.mxu0 0
    %1934 = vmatprep.subr.bf16.mxu0 0
    %1935 = vmatpush1.bf16.msra.mxu0 0
    %1936 = vmatprep.subr.bf16.mxu0 0
    %1937 = vmatpush1.bf16.msra.mxu0 0
    %1938 = vmatprep.mubr.bf16.mxu0 0
    %1939 = vmatmul.mubr.bf16.gmra.mrb[0].mxu0 %v1905
    %v1940 = vpop.f32.mrb[0].mxu0
    %v1941 = vadd.f32 %v1261, %v1940
    %v1942 = vpop.f32.mrb[0].mxu0
    %v1943 = vpop.f32.mrb[0].mxu0
    %v1944 = vpop.f32.mrb[0].mxu0
    %1945 = vdwg.mxu0
    %1946 = vst [vmem:[#allocation15 + $0x38] sm:$0xff] %v1941
    %s1947 = scalar_lea.vmem [#allocation16], 8
    %1948 = vst [vmem:[%s1947] sm:$0xff] %v1904
    // Predicated region
    $region70: #{tpu_custom_call.1} parent=1 // pred_check
      _
    $region71: #{tpu_custom_call.1} parent=1 // pred_check_branch
      %1950 = sbr.rel (0) target = $region73
    $region72: #{tpu_custom_call.1} parent=1 // pred_region
      %s1952 = ssub.s32 1024, 1024
      %1953 = vsyncadd [#allocation5], %s1952
      %s1954 = sshll.u32 [#allocation15], 4
      %s1955 = int_to_ptr.vmem [resolvable:$true] %s1954
      %1960 = dma.vmem_to_hbm [thread:$0]  %s1955, 1024, %s10, [#allocation5], 128, 128, 8
    $region73: #{tpu_custom_call.1} parent=1 // pred_fallthru
      _
    // Predicated region
    $region74: #{tpu_custom_call.1} parent=1 // pred_check
      _
    $region75: #{tpu_custom_call.1} parent=1 // pred_check_branch
      %1962 = sbr.rel (0) target = $region77
    $region76: #{tpu_custom_call.1} parent=1 // pred_region
      %s1964 = ssub.s32 256, 256
      %1965 = vsyncadd [#allocation17], %s1964
      %s1966 = sshll.u32 [#allocation16], 4
      %s1967 = int_to_ptr.vmem [resolvable:$true] %s1966
      %1972 = dma.vmem_to_hbm [thread:$0]  %s1967, 256, %s11, [#allocation17], 128, 128, 8
    $region77: #{tpu_custom_call.1} parent=1 // pred_fallthru
      _
    // Predicated region
    $region78: #{tpu_custom_call.1} parent=1 // pred_check
      _
    $region79: #{tpu_custom_call.1} parent=1 // pred_check_branch
      %1974 = sbr.rel (0) target = $region81
    $region80: #{tpu_custom_call.1} parent=1 // pred_region
      %1975 = dma.done [#allocation5], 1024
    $region81: #{tpu_custom_call.1} parent=1 // pred_fallthru
      _
    // Predicated region
    $region82: #{tpu_custom_call.1} parent=1 // pred_check
      _
    $region83: #{tpu_custom_call.1} parent=1 // pred_check_branch
      %1977 = sbr.rel (0) target = $region85
    $region84: #{tpu_custom_call.1} parent=1 // pred_region
      %1978 = dma.done [#allocation17], 256
    $region85: #{tpu_custom_call.1} parent=1 // pred_fallthru
      _
    %1979 = vsyncpa [#allocation4], 1
    %1980 = vsyncpa [#allocation7], 1
    %1981 = vsyncpa [#allocation10], 1
    %1982 = vsyncpa [#allocation13], 1
    %1983 = vsyncpa [#allocation5], 1
    %1984 = vsyncpa [#allocation17], 1

</llo_original>
